<compile_context>
chip_gen: v6e
topology: v6e:2x2x1
jax: 0.10.0
libtpu: 0.0.40
codegen_flags: <defaults>
</compile_context>

<pallas_src>
import functools

import jax
import jax.numpy as jnp
from jax.experimental import pallas as pl
from jax.experimental.pallas import tpu as pltpu


# ----------------------------------------------------------------------------
# Module configuration (mirrors ConvDecoder.__init__)
# ----------------------------------------------------------------------------
INPUT_SHAPE = (4, 16, 16)       # (channels_in, H, W)
HIDDEN_LAYERS = [8, 16]
LATENT_DIM = 32
ENC_H_OUT = [16, 8, 4]
ENC_W_OUT = [16, 8, 4]
STRIDE = (2, 2)
KERNEL_SZ = (3, 3)
PADDING = (1, 1)
BN_EPS = 1e-5
LEAKY_SLOPE = 0.01


def build_decoder_configs():
    channels_in, _, _ = INPUT_SHAPE
    layer_dims = [channels_in] + list(HIDDEN_LAYERS)
    final_h, final_w = ENC_H_OUT[-1], ENC_W_OUT[-1]
    enc_h = list(reversed(ENC_H_OUT))
    hidden = list(reversed(HIDDEN_LAYERS))
    configs = []
    for h in range(len(hidden)):
        op = (1, 1) if enc_h[h + 1] % 2 == 0 else (0, 0)
        if h != len(hidden) - 1:
            configs.append(dict(cin=hidden[h], cout=hidden[h + 1], op=op,
                                bn=True, act="leaky_relu"))
        else:
            configs.append(dict(cin=hidden[h], cout=channels_in, op=op,
                                bn=False, act="tanh"))
    return configs, layer_dims, final_h, final_w


CONFIGS, LAYER_DIMS, FINAL_H, FINAL_W = build_decoder_configs()


# ----------------------------------------------------------------------------
# Pallas kernel: fused  y = act((x @ W) * scale + shift)
# ----------------------------------------------------------------------------
def _fused_matmul_kernel(x_ref, w_ref, scale_ref, shift_ref, o_ref, acc_ref, *, act):
    k = pl.program_id(2)

    @pl.when(k == 0)
    def _init():
        acc_ref[...] = jnp.zeros_like(acc_ref)

    acc_ref[...] += jnp.dot(x_ref[...], w_ref[...],
                            preferred_element_type=jnp.float32)

    @pl.when(k == pl.num_programs(2) - 1)
    def _finalize():
        y = acc_ref[...] * scale_ref[...] + shift_ref[...]
        if act == "relu":
            y = jnp.maximum(y, 0.0)
        elif act == "leaky_relu":
            y = jnp.where(y >= 0.0, y, LEAKY_SLOPE * y)
        elif act == "tanh":
            y = jnp.tanh(y)
        o_ref[...] = y.astype(o_ref.dtype)


def _round_up(n, m):
    return ((n + m - 1) // m) * m


def fused_matmul(x, w, scale, shift, act, *, tm_cap=512, tn_cap=512, tk_cap=512):
    """y = act((x @ w) * scale + shift), scale/shift broadcast over rows."""
    M, K = x.shape
    K2, N = w.shape
    assert K == K2

    # vreg-aligned tile sizes, as large as the (padded) dim up to a VMEM-safe cap
    Mp, Kp, Np = _round_up(M, 8), _round_up(K, 128), _round_up(N, 128)
    tm, tk, tn = min(Mp, tm_cap), min(Kp, tk_cap), min(Np, tn_cap)
    Mp, Kp, Np = _round_up(Mp, tm), _round_up(Kp, tk), _round_up(Np, tn)

    xp = x if (Mp, Kp) == (M, K) else jnp.pad(x, ((0, Mp - M), (0, Kp - K)))
    wp = w if (Kp, Np) == (K, N) else jnp.pad(w, ((0, Kp - K), (0, Np - N)))
    scalep = scale.reshape(1, N).astype(jnp.float32)
    shiftp = shift.reshape(1, N).astype(jnp.float32)
    if Np != N:
        scalep = jnp.pad(scalep, ((0, 0), (0, Np - N)))
        shiftp = jnp.pad(shiftp, ((0, 0), (0, Np - N)))

    grid = (Mp // tm, Np // tn, Kp // tk)

    out = pl.pallas_call(
        functools.partial(_fused_matmul_kernel, act=act),
        out_shape=jax.ShapeDtypeStruct((Mp, Np), jnp.float32),
        grid_spec=pltpu.PrefetchScalarGridSpec(
            num_scalar_prefetch=0,
            grid=grid,
            in_specs=[
                pl.BlockSpec((tm, tk), lambda i, j, k: (i, k)),
                pl.BlockSpec((tk, tn), lambda i, j, k: (k, j)),
                pl.BlockSpec((1, tn), lambda i, j, k: (0, j)),
                pl.BlockSpec((1, tn), lambda i, j, k: (0, j)),
            ],
            out_specs=pl.BlockSpec((tm, tn), lambda i, j, k: (i, j)),
            scratch_shapes=[pltpu.VMEM((tm, tn), jnp.float32)],
        ),
        compiler_params=pltpu.CompilerParams(
            dimension_semantics=("parallel", "parallel", "arbitrary"),
        ),
    )(xp, wp, scalep, shiftp)

    return out[:M, :N] if (Mp, Np) != (M, N) else out


# ----------------------------------------------------------------------------
# ConvTranspose2d (+ folded bias/BN + activation) via im2col + fused matmul
# ----------------------------------------------------------------------------
def conv_transpose2d_fused(x, w_t, scale, shift, act, *, stride, padding, output_padding):
    """x: (B, Cin, H, W); w_t: torch ConvTranspose2d weight (Cin, Cout, KH, KW)."""
    B, Cin, H, W = x.shape
    _, Cout, KH, KW = w_t.shape
    sh, sw = stride
    ph, pw = padding
    oph, opw = output_padding
    OH = (H - 1) * sh - 2 * ph + (KH - 1) + oph + 1
    OW = (W - 1) * sw - 2 * pw + (KW - 1) + opw + 1

    # ---- glue: zero-upsample + pad + im2col (pure data movement) ----------
    z = jnp.zeros((B, Cin, (H - 1) * sh + 1, (W - 1) * sw + 1), x.dtype)
    z = z.at[:, :, ::sh, ::sw].set(x)
    pt, plf = KH - 1 - ph, KW - 1 - pw
    pb, prt = pt + oph, plf + opw
    z = jnp.pad(z, ((0, 0), (0, 0), (pt, pb), (plf, prt)))

    patches = [z[:, :, kh:kh + OH, kw:kw + OW]
               for kh in range(KH) for kw in range(KW)]
    p = jnp.stack(patches, axis=-1)                          # (B, Cin, OH, OW, KH*KW)
    p = p.transpose(0, 2, 3, 1, 4).reshape(B * OH * OW, Cin * KH * KW)

    # flipped transposed-conv weight -> im2col matmul weight [(ic,kh,kw), oc]
    wm = w_t[:, :, ::-1, ::-1].transpose(0, 2, 3, 1).reshape(Cin * KH * KW, Cout)

    # ---- hot path: Pallas fused matmul + affine + activation --------------
    out = fused_matmul(p, wm, scale, shift, act)             # (B*OH*OW, Cout)
    return out.reshape(B, OH, OW, Cout).transpose(0, 3, 1, 2)


# ----------------------------------------------------------------------------
# ConvDecoder forward
# ----------------------------------------------------------------------------
def conv_decoder_forward(z, params):
    fc_out = params["fc_w"].shape[1]
    # decoder_input: Linear + ReLU (Pallas fused matmul)
    x_flat = fused_matmul(z, params["fc_w"],
                          jnp.ones((fc_out,), jnp.float32), params["fc_b"],
                          act="relu")
    # decoder_view: torch .view() == zero-cost metadata reshape (no copy kernel)
    x = x_flat.reshape(-1, LAYER_DIMS[-1], FINAL_H, FINAL_W)

    # decoder: ConvTranspose2d (+BN) (+LeakyReLU / Tanh) layers
    for cfg, lp in zip(CONFIGS, params["layers"]):
        if cfg["bn"]:
            s = lp["gamma"] * jax.lax.rsqrt(lp["var"] + BN_EPS)
            scale = s
            shift = lp["b"] * s + (lp["beta"] - lp["mean"] * s)
        else:
            scale = jnp.ones_like(lp["b"])
            shift = lp["b"]
        x = conv_transpose2d_fused(x, lp["w"], scale, shift, cfg["act"],
                                   stride=STRIDE, padding=PADDING,
                                   output_padding=cfg["op"])
    return x


# ----------------------------------------------------------------------------
# Pure-JAX reference (independent path: lax dilated conv) for correctness check
# ----------------------------------------------------------------------------
def conv_decoder_reference(z, params):
    x = jnp.maximum(
        jnp.dot(z, params["fc_w"], precision=jax.lax.Precision.HIGHEST)
        + params["fc_b"], 0.0)
    x = x.reshape(-1, LAYER_DIMS[-1], FINAL_H, FINAL_W)
    for cfg, lp in zip(CONFIGS, params["layers"]):
        KH, KW = KERNEL_SZ
        pt, plf = KH - 1 - PADDING[0], KW - 1 - PADDING[1]
        pb, prt = pt + cfg["op"][0], plf + cfg["op"][1]
        w_conv = jnp.transpose(lp["w"], (1, 0, 2, 3))[:, :, ::-1, ::-1]
        y = jax.lax.conv_general_dilated(
            x, w_conv, window_strides=(1, 1),
            padding=((pt, pb), (plf, prt)),
            lhs_dilation=STRIDE, rhs_dilation=(1, 1),
            dimension_numbers=("NCHW", "OIHW", "NCHW"),
            precision=jax.lax.Precision.HIGHEST)
        y = y + lp["b"][None, :, None, None]
        if cfg["bn"]:
            s = lp["gamma"] * jax.lax.rsqrt(lp["var"] + BN_EPS)
            y = (y - lp["mean"][None, :, None, None]) * s[None, :, None, None] \
                + lp["beta"][None, :, None, None]
            y = jnp.where(y >= 0.0, y, LEAKY_SLOPE * y)
        else:
            y = jnp.tanh(y)
        x = y
    return x


# ----------------------------------------------------------------------------
# Parameter init + driver
# ----------------------------------------------------------------------------
def init_params(key):
    keys = iter(jax.random.split(key, 4 + 6 * len(CONFIGS)))
    fc_out = LAYER_DIMS[-1] * FINAL_H * FINAL_W
    params = {
        "fc_w": 0.1 * jax.random.normal(next(keys), (LATENT_DIM, fc_out), jnp.float32),
        "fc_b": 0.1 * jax.random.normal(next(keys), (fc_out,), jnp.float32),
        "layers": [],
    }
    for cfg in CONFIGS:
        lp = {
            "w": 0.2 * jax.random.normal(next(keys),
                                         (cfg["cin"], cfg["cout"], *KERNEL_SZ),
                                         jnp.float32),
            "b": 0.1 * jax.random.normal(next(keys), (cfg["cout"],), jnp.float32),
        }
        if cfg["bn"]:
            lp["gamma"] = 1.0 + 0.1 * jax.random.normal(next(keys), (cfg["cout"],), jnp.float32)
            lp["beta"] = 0.1 * jax.random.normal(next(keys), (cfg["cout"],), jnp.float32)
            lp["mean"] = 0.1 * jax.random.normal(next(keys), (cfg["cout"],), jnp.float32)
            lp["var"] = 0.5 + jnp.abs(0.2 * jax.random.normal(next(keys), (cfg["cout"],), jnp.float32))
        params["layers"].append(lp)
    return params


if __name__ == "__main__":
    key = jax.random.PRNGKey(0)
    k_z, k_p = jax.random.split(key)
    z = jax.random.normal(k_z, (2, LATENT_DIM), dtype=jnp.float32)
    params = init_params(k_p)

    fwd = jax.jit(conv_decoder_forward)
    y = fwd(z, params)
    jax.block_until_ready(y)

    expected_shape = (2, INPUT_SHAPE[0], INPUT_SHAPE[1], INPUT_SHAPE[2])
    assert y.shape == expected_shape, y.shape
    assert y.dtype == jnp.float32

    y_ref = conv_decoder_reference(z, params)
    max_err = float(jnp.max(jnp.abs(y - y_ref)))
    assert jnp.allclose(y, y_ref, atol=2e-3, rtol=2e-2), max_err

    print("KERNEL_OK")
</pallas_src>

<mosaic_0001>
module attributes {stable_mosaic.version = 11 : i64} {
  func.func @_fused_matmul_kernel(%arg0: i32, %arg1: i32, %arg2: i32, %arg3: memref<8x128xf32, #tpu.memory_space<vmem>>, %arg4: memref<128x256xf32, #tpu.memory_space<vmem>>, %arg5: memref<1x256xf32, #tpu.memory_space<vmem>>, %arg6: memref<1x256xf32, #tpu.memory_space<vmem>>, %arg7: memref<8x256xf32, #tpu.memory_space<vmem>>, %arg8: memref<8x256xf32, #tpu.memory_space<vmem>>) attributes {dimension_semantics = [#tpu.dimension_semantics<parallel>, #tpu.dimension_semantics<parallel>, #tpu.dimension_semantics<arbitrary>], iteration_bounds = array<i64: 1, 1, 1>, scalar_prefetch = 0 : i64, scratch_operands = 1 : i64, tpu.core_type = #tpu.core_type<tc>, window_params = [{transform_indices = @transform_0, window_bounds = array<i64: 8, 128>}, {transform_indices = @transform_1, window_bounds = array<i64: 128, 256>}, {transform_indices = @transform_2, window_bounds = array<i64: 1, 256>}, {transform_indices = @transform_3, window_bounds = array<i64: 1, 256>}, {transform_indices = @transform_4, window_bounds = array<i64: 8, 256>}]} {
    %c0_i32 = arith.constant 0 : i32
    %0 = arith.cmpi eq, %arg2, %c0_i32 : i32
    %1 = arith.extui %0 : i1 to i32
    %c0_i32_0 = arith.constant 0 : i32
    %2 = arith.cmpi ne, %1, %c0_i32_0 : i32
    scf.if %2 {
      %cst_10 = arith.constant 0.000000e+00 : f32
      %12 = vector.broadcast %cst_10 : f32 to vector<8x256xf32>
      %c0_11 = arith.constant 0 : index
      %c0_12 = arith.constant 0 : index
      %13 = vector.load %arg8[%c0_11, %c0_12] : memref<8x256xf32, #tpu.memory_space<vmem>>, vector<8x256xf32>
      tpu.vector_store %arg8[%c0_11, %c0_12], %12 {strides = array<i32>} : memref<8x256xf32, #tpu.memory_space<vmem>>, vector<8x256xf32>,
    } else {
    }
    %c0 = arith.constant 0 : index
    %c0_1 = arith.constant 0 : index
    %3 = vector.load %arg8[%c0, %c0_1] : memref<8x256xf32, #tpu.memory_space<vmem>>, vector<8x256xf32>
    %c0_2 = arith.constant 0 : index
    %c0_3 = arith.constant 0 : index
    %4 = vector.load %arg3[%c0_2, %c0_3] : memref<8x128xf32, #tpu.memory_space<vmem>>, vector<8x128xf32>
    %c0_4 = arith.constant 0 : index
    %c0_5 = arith.constant 0 : index
    %5 = vector.load %arg4[%c0_4, %c0_5] : memref<128x256xf32, #tpu.memory_space<vmem>>, vector<128x256xf32>
    %cst = arith.constant dense<0.000000e+00> : vector<8x256xf32>
    %6 = tpu.matmul %4, %5, %cst {dimension_numbers = #tpu.dot_dimension_numbers<[1], [0], [0], [1], [0, 0, 1, 1], [], []>} : vector<8x128xf32>, vector<128x256xf32>, vector<8x256xf32> -> vector<8x256xf32>
    %7 = arith.addf %3, %6 : vector<8x256xf32>
    %c0_6 = arith.constant 0 : index
    %c0_7 = arith.constant 0 : index
    %8 = vector.load %arg8[%c0_6, %c0_7] : memref<8x256xf32, #tpu.memory_space<vmem>>, vector<8x256xf32>
    tpu.vector_store %arg8[%c0_6, %c0_7], %7 {strides = array<i32>} : memref<8x256xf32, #tpu.memory_space<vmem>>, vector<8x256xf32>,
    %c0_i32_8 = arith.constant 0 : i32
    %9 = arith.cmpi eq, %arg2, %c0_i32_8 : i32
    %10 = arith.extui %9 : i1 to i32
    %c0_i32_9 = arith.constant 0 : i32
    %11 = arith.cmpi ne, %10, %c0_i32_9 : i32
    scf.if %11 {
      %c0_10 = arith.constant 0 : index
      %c0_11 = arith.constant 0 : index
      %12 = vector.load %arg8[%c0_10, %c0_11] : memref<8x256xf32, #tpu.memory_space<vmem>>, vector<8x256xf32>
      %c0_12 = arith.constant 0 : index
      %c0_13 = arith.constant 0 : index
      %13 = vector.load %arg5[%c0_12, %c0_13] : memref<1x256xf32, #tpu.memory_space<vmem>>, vector<1x256xf32>
      %14 = vector.broadcast %13 : vector<1x256xf32> to vector<8x256xf32>
      %15 = arith.mulf %12, %14 : vector<8x256xf32>
      %c0_14 = arith.constant 0 : index
      %c0_15 = arith.constant 0 : index
      %16 = vector.load %arg6[%c0_14, %c0_15] : memref<1x256xf32, #tpu.memory_space<vmem>>, vector<1x256xf32>
      %17 = vector.broadcast %16 : vector<1x256xf32> to vector<8x256xf32>
      %18 = arith.addf %15, %17 : vector<8x256xf32>
      %cst_16 = arith.constant 0.000000e+00 : f32
      %19 = vector.broadcast %cst_16 : f32 to vector<8x256xf32>
      %20 = arith.maximumf %18, %19 : vector<8x256xf32>
      %c0_17 = arith.constant 0 : index
      %c0_18 = arith.constant 0 : index
      %21 = vector.load %arg7[%c0_17, %c0_18] : memref<8x256xf32, #tpu.memory_space<vmem>>, vector<8x256xf32>
      tpu.vector_store %arg7[%c0_17, %c0_18], %20 {strides = array<i32>} : memref<8x256xf32, #tpu.memory_space<vmem>>, vector<8x256xf32>,
    } else {
    }
    return
  }
  func.func @transform_0(%arg0: i32, %arg1: i32, %arg2: i32) -> (i32, i32) {
    %c0_i32 = arith.constant 0 : i32
    return %arg0, %arg2 : i32, i32
  }
  func.func @transform_1(%arg0: i32, %arg1: i32, %arg2: i32) -> (i32, i32) {
    %c0_i32 = arith.constant 0 : i32
    return %arg2, %arg1 : i32, i32
  }
  func.func @transform_2(%arg0: i32, %arg1: i32, %arg2: i32) -> (i32, i32) {
    %c0_i32 = arith.constant 0 : i32
    %c0_i32_0 = arith.constant 0 : i32
    return %c0_i32, %arg1 : i32, i32
  }
  func.func @transform_3(%arg0: i32, %arg1: i32, %arg2: i32) -> (i32, i32) {
    %c0_i32 = arith.constant 0 : i32
    %c0_i32_0 = arith.constant 0 : i32
    return %c0_i32, %arg1 : i32, i32
  }
  func.func @transform_4(%arg0: i32, %arg1: i32, %arg2: i32) -> (i32, i32) {
    %c0_i32 = arith.constant 0 : i32
    return %arg0, %arg1 : i32, i32
  }
}

module attributes {stable_mosaic.version = 11 : i64} {
  func.func @_fused_matmul_kernel(%arg0: i32, %arg1: i32, %arg2: i32, %arg3: memref<128x256xf32, #tpu.memory_space<vmem>>, %arg4: memref<256x128xf32, #tpu.memory_space<vmem>>, %arg5: memref<1x128xf32, #tpu.memory_space<vmem>>, %arg6: memref<1x128xf32, #tpu.memory_space<vmem>>, %arg7: memref<128x128xf32, #tpu.memory_space<vmem>>, %arg8: memref<128x128xf32, #tpu.memory_space<vmem>>) attributes {dimension_semantics = [#tpu.dimension_semantics<parallel>, #tpu.dimension_semantics<parallel>, #tpu.dimension_semantics<arbitrary>], iteration_bounds = array<i64: 1, 1, 1>, scalar_prefetch = 0 : i64, scratch_operands = 1 : i64, tpu.core_type = #tpu.core_type<tc>, window_params = [{transform_indices = @transform_0, window_bounds = array<i64: 128, 256>}, {transform_indices = @transform_1, window_bounds = array<i64: 256, 128>}, {transform_indices = @transform_2, window_bounds = array<i64: 1, 128>}, {transform_indices = @transform_3, window_bounds = array<i64: 1, 128>}, {transform_indices = @transform_4, window_bounds = array<i64: 128, 128>}]} {
    %c0_i32 = arith.constant 0 : i32
    %0 = arith.cmpi eq, %arg2, %c0_i32 : i32
    %1 = arith.extui %0 : i1 to i32
    %c0_i32_0 = arith.constant 0 : i32
    %2 = arith.cmpi ne, %1, %c0_i32_0 : i32
    scf.if %2 {
      %cst_10 = arith.constant 0.000000e+00 : f32
      %12 = vector.broadcast %cst_10 : f32 to vector<128x128xf32>
      %c0_11 = arith.constant 0 : index
      %c0_12 = arith.constant 0 : index
      %13 = vector.load %arg8[%c0_11, %c0_12] : memref<128x128xf32, #tpu.memory_space<vmem>>, vector<128x128xf32>
      tpu.vector_store %arg8[%c0_11, %c0_12], %12 {strides = array<i32>} : memref<128x128xf32, #tpu.memory_space<vmem>>, vector<128x128xf32>,
    } else {
    }
    %c0 = arith.constant 0 : index
    %c0_1 = arith.constant 0 : index
    %3 = vector.load %arg8[%c0, %c0_1] : memref<128x128xf32, #tpu.memory_space<vmem>>, vector<128x128xf32>
    %c0_2 = arith.constant 0 : index
    %c0_3 = arith.constant 0 : index
    %4 = vector.load %arg3[%c0_2, %c0_3] : memref<128x256xf32, #tpu.memory_space<vmem>>, vector<128x256xf32>
    %c0_4 = arith.constant 0 : index
    %c0_5 = arith.constant 0 : index
    %5 = vector.load %arg4[%c0_4, %c0_5] : memref<256x128xf32, #tpu.memory_space<vmem>>, vector<256x128xf32>
    %cst = arith.constant dense<0.000000e+00> : vector<128x128xf32>
    %6 = tpu.matmul %4, %5, %cst {dimension_numbers = #tpu.dot_dimension_numbers<[1], [0], [0], [1], [0, 0, 1, 1], [], []>} : vector<128x256xf32>, vector<256x128xf32>, vector<128x128xf32> -> vector<128x128xf32>
    %7 = arith.addf %3, %6 : vector<128x128xf32>
    %c0_6 = arith.constant 0 : index
    %c0_7 = arith.constant 0 : index
    %8 = vector.load %arg8[%c0_6, %c0_7] : memref<128x128xf32, #tpu.memory_space<vmem>>, vector<128x128xf32>
    tpu.vector_store %arg8[%c0_6, %c0_7], %7 {strides = array<i32>} : memref<128x128xf32, #tpu.memory_space<vmem>>, vector<128x128xf32>,
    %c0_i32_8 = arith.constant 0 : i32
    %9 = arith.cmpi eq, %arg2, %c0_i32_8 : i32
    %10 = arith.extui %9 : i1 to i32
    %c0_i32_9 = arith.constant 0 : i32
    %11 = arith.cmpi ne, %10, %c0_i32_9 : i32
    scf.if %11 {
      %c0_10 = arith.constant 0 : index
      %c0_11 = arith.constant 0 : index
      %12 = vector.load %arg8[%c0_10, %c0_11] : memref<128x128xf32, #tpu.memory_space<vmem>>, vector<128x128xf32>
      %c0_12 = arith.constant 0 : index
      %c0_13 = arith.constant 0 : index
      %13 = vector.load %arg5[%c0_12, %c0_13] : memref<1x128xf32, #tpu.memory_space<vmem>>, vector<1x128xf32>
      %14 = vector.broadcast %13 : vector<1x128xf32> to vector<128x128xf32>
      %15 = arith.mulf %12, %14 : vector<128x128xf32>
      %c0_14 = arith.constant 0 : index
      %c0_15 = arith.constant 0 : index
      %16 = vector.load %arg6[%c0_14, %c0_15] : memref<1x128xf32, #tpu.memory_space<vmem>>, vector<1x128xf32>
      %17 = vector.broadcast %16 : vector<1x128xf32> to vector<128x128xf32>
      %18 = arith.addf %15, %17 : vector<128x128xf32>
      %cst_16 = arith.constant 0.000000e+00 : f32
      %19 = vector.broadcast %cst_16 : f32 to vector<128x128xf32>
      %20 = arith.cmpf oge, %18, %19 : vector<128x128xf32>
      %cst_17 = arith.constant 0.00999999977 : f32
      %21 = vector.broadcast %cst_17 : f32 to vector<128x128xf32>
      %22 = arith.mulf %21, %18 : vector<128x128xf32>
      %23 = arith.select %20, %18, %22 : vector<128x128xi1>, vector<128x128xf32>
      %c0_18 = arith.constant 0 : index
      %c0_19 = arith.constant 0 : index
      %24 = vector.load %arg7[%c0_18, %c0_19] : memref<128x128xf32, #tpu.memory_space<vmem>>, vector<128x128xf32>
      tpu.vector_store %arg7[%c0_18, %c0_19], %23 {strides = array<i32>} : memref<128x128xf32, #tpu.memory_space<vmem>>, vector<128x128xf32>,
    } else {
    }
    return
  }
  func.func @transform_0(%arg0: i32, %arg1: i32, %arg2: i32) -> (i32, i32) {
    %c0_i32 = arith.constant 0 : i32
    return %arg0, %arg2 : i32, i32
  }
  func.func @transform_1(%arg0: i32, %arg1: i32, %arg2: i32) -> (i32, i32) {
    %c0_i32 = arith.constant 0 : i32
    return %arg2, %arg1 : i32, i32
  }
  func.func @transform_2(%arg0: i32, %arg1: i32, %arg2: i32) -> (i32, i32) {
    %c0_i32 = arith.constant 0 : i32
    %c0_i32_0 = arith.constant 0 : i32
    return %c0_i32, %arg1 : i32, i32
  }
  func.func @transform_3(%arg0: i32, %arg1: i32, %arg2: i32) -> (i32, i32) {
    %c0_i32 = arith.constant 0 : i32
    %c0_i32_0 = arith.constant 0 : i32
    return %c0_i32, %arg1 : i32, i32
  }
  func.func @transform_4(%arg0: i32, %arg1: i32, %arg2: i32) -> (i32, i32) {
    %c0_i32 = arith.constant 0 : i32
    return %arg0, %arg1 : i32, i32
  }
}

module attributes {stable_mosaic.version = 11 : i64} {
  func.func @_fused_matmul_kernel(%arg0: i32, %arg1: i32, %arg2: i32, %arg3: memref<512x128xf32, #tpu.memory_space<vmem>>, %arg4: memref<128x128xf32, #tpu.memory_space<vmem>>, %arg5: memref<1x128xf32, #tpu.memory_space<vmem>>, %arg6: memref<1x128xf32, #tpu.memory_space<vmem>>, %arg7: memref<512x128xf32, #tpu.memory_space<vmem>>, %arg8: memref<512x128xf32, #tpu.memory_space<vmem>>) attributes {dimension_semantics = [#tpu.dimension_semantics<parallel>, #tpu.dimension_semantics<parallel>, #tpu.dimension_semantics<arbitrary>], iteration_bounds = array<i64: 1, 1, 1>, scalar_prefetch = 0 : i64, scratch_operands = 1 : i64, tpu.core_type = #tpu.core_type<tc>, window_params = [{transform_indices = @transform_0, window_bounds = array<i64: 512, 128>}, {transform_indices = @transform_1, window_bounds = array<i64: 128, 128>}, {transform_indices = @transform_2, window_bounds = array<i64: 1, 128>}, {transform_indices = @transform_3, window_bounds = array<i64: 1, 128>}, {transform_indices = @transform_4, window_bounds = array<i64: 512, 128>}]} {
    %c0_i32 = arith.constant 0 : i32
    %0 = arith.cmpi eq, %arg2, %c0_i32 : i32
    %1 = arith.extui %0 : i1 to i32
    %c0_i32_0 = arith.constant 0 : i32
    %2 = arith.cmpi ne, %1, %c0_i32_0 : i32
    scf.if %2 {
      %cst_10 = arith.constant 0.000000e+00 : f32
      %12 = vector.broadcast %cst_10 : f32 to vector<512x128xf32>
      %c0_11 = arith.constant 0 : index
      %c0_12 = arith.constant 0 : index
      %13 = vector.load %arg8[%c0_11, %c0_12] : memref<512x128xf32, #tpu.memory_space<vmem>>, vector<512x128xf32>
      tpu.vector_store %arg8[%c0_11, %c0_12], %12 {strides = array<i32>} : memref<512x128xf32, #tpu.memory_space<vmem>>, vector<512x128xf32>,
    } else {
    }
    %c0 = arith.constant 0 : index
    %c0_1 = arith.constant 0 : index
    %3 = vector.load %arg8[%c0, %c0_1] : memref<512x128xf32, #tpu.memory_space<vmem>>, vector<512x128xf32>
    %c0_2 = arith.constant 0 : index
    %c0_3 = arith.constant 0 : index
    %4 = vector.load %arg3[%c0_2, %c0_3] : memref<512x128xf32, #tpu.memory_space<vmem>>, vector<512x128xf32>
    %c0_4 = arith.constant 0 : index
    %c0_5 = arith.constant 0 : index
    %5 = vector.load %arg4[%c0_4, %c0_5] : memref<128x128xf32, #tpu.memory_space<vmem>>, vector<128x128xf32>
    %cst = arith.constant dense<0.000000e+00> : vector<512x128xf32>
    %6 = tpu.matmul %4, %5, %cst {dimension_numbers = #tpu.dot_dimension_numbers<[1], [0], [0], [1], [0, 0, 1, 1], [], []>} : vector<512x128xf32>, vector<128x128xf32>, vector<512x128xf32> -> vector<512x128xf32>
    %7 = arith.addf %3, %6 : vector<512x128xf32>
    %c0_6 = arith.constant 0 : index
    %c0_7 = arith.constant 0 : index
    %8 = vector.load %arg8[%c0_6, %c0_7] : memref<512x128xf32, #tpu.memory_space<vmem>>, vector<512x128xf32>
    tpu.vector_store %arg8[%c0_6, %c0_7], %7 {strides = array<i32>} : memref<512x128xf32, #tpu.memory_space<vmem>>, vector<512x128xf32>,
    %c0_i32_8 = arith.constant 0 : i32
    %9 = arith.cmpi eq, %arg2, %c0_i32_8 : i32
    %10 = arith.extui %9 : i1 to i32
    %c0_i32_9 = arith.constant 0 : i32
    %11 = arith.cmpi ne, %10, %c0_i32_9 : i32
    scf.if %11 {
      %c0_10 = arith.constant 0 : index
      %c0_11 = arith.constant 0 : index
      %12 = vector.load %arg8[%c0_10, %c0_11] : memref<512x128xf32, #tpu.memory_space<vmem>>, vector<512x128xf32>
      %c0_12 = arith.constant 0 : index
      %c0_13 = arith.constant 0 : index
      %13 = vector.load %arg5[%c0_12, %c0_13] : memref<1x128xf32, #tpu.memory_space<vmem>>, vector<1x128xf32>
      %14 = vector.broadcast %13 : vector<1x128xf32> to vector<512x128xf32>
      %15 = arith.mulf %12, %14 : vector<512x128xf32>
      %c0_14 = arith.constant 0 : index
      %c0_15 = arith.constant 0 : index
      %16 = vector.load %arg6[%c0_14, %c0_15] : memref<1x128xf32, #tpu.memory_space<vmem>>, vector<1x128xf32>
      %17 = vector.broadcast %16 : vector<1x128xf32> to vector<512x128xf32>
      %18 = arith.addf %15, %17 : vector<512x128xf32>
      %19 = math.tanh %18 : vector<512x128xf32>
      %c0_16 = arith.constant 0 : index
      %c0_17 = arith.constant 0 : index
      %20 = vector.load %arg7[%c0_16, %c0_17] : memref<512x128xf32, #tpu.memory_space<vmem>>, vector<512x128xf32>
      tpu.vector_store %arg7[%c0_16, %c0_17], %19 {strides = array<i32>} : memref<512x128xf32, #tpu.memory_space<vmem>>, vector<512x128xf32>,
    } else {
    }
    return
  }
  func.func @transform_0(%arg0: i32, %arg1: i32, %arg2: i32) -> (i32, i32) {
    %c0_i32 = arith.constant 0 : i32
    return %arg0, %arg2 : i32, i32
  }
  func.func @transform_1(%arg0: i32, %arg1: i32, %arg2: i32) -> (i32, i32) {
    %c0_i32 = arith.constant 0 : i32
    return %arg2, %arg1 : i32, i32
  }
  func.func @transform_2(%arg0: i32, %arg1: i32, %arg2: i32) -> (i32, i32) {
    %c0_i32 = arith.constant 0 : i32
    %c0_i32_0 = arith.constant 0 : i32
    return %c0_i32, %arg1 : i32, i32
  }
  func.func @transform_3(%arg0: i32, %arg1: i32, %arg2: i32) -> (i32, i32) {
    %c0_i32 = arith.constant 0 : i32
    %c0_i32_0 = arith.constant 0 : i32
    return %c0_i32, %arg1 : i32, i32
  }
  func.func @transform_4(%arg0: i32, %arg1: i32, %arg2: i32) -> (i32, i32) {
    %c0_i32 = arith.constant 0 : i32
    return %arg0, %arg1 : i32, i32
  }
}

</mosaic_0001>

<llo_original>
// kernel: conv_decoder_forward.3
$region0: #{conv_decoder_forward.3}
  #allocation0 [shape = 'u32[]', space=smem, size = 0x4, offset = 0x4, fixed_abs, tag = 'smem constant byte address 0x4 - core index']
  #allocation1 [shape = 'u32[144,128]{1,0:T(1,128)}', space=vmem, size = 0x12000, scoped, tag = 'internal scratch']
  #allocation2 [shape = 'f32[8,256]{1,0:T(8,128)}', space=vmem, size = 0x2000, scoped, tag = 'scratch operand']
  %s0 = inlined_call_operand.vmem [shape: f32[8,128], index: 0, kind: input, shape index: {}]
  %s1 = inlined_call_operand.vmem [shape: f32[128,256], index: 1, kind: input, shape index: {}]
  %s2 = inlined_call_operand.vmem [shape: f32[1,256], index: 2, kind: input, shape index: {}]
  %s3 = inlined_call_operand.hbm [shape: f32[1,256], index: 3, kind: input, shape index: {}]
  %s4 = inlined_call_operand.vmem [shape: f32[8,256], index: 4, kind: output, shape index: {}]
  %s5 = sld [smem:[#allocation0]]
  $region38: #{conv_decoder_forward.3} parent=0
    _
  %s7 = ssub.s32 1, %s5
  %s8 = scalar_select 0, %s7, %s5
  $region1: #{conv_decoder_forward.3} parent=0
    #allocation3 [shape = 'u8[1024]{0}', space=vmem, size = 0x400, scoped, tag = 'input window, operand 3, single buffered']
    #allocation4 [shape = 's32[1]{0}', space=sflag, size = 0x4, scoped, tag = 'scoped memory for conv_decoder_forward.3']
    %9 = vsyncpa [#allocation4], 0
    // Predicated region
    $region2: #{conv_decoder_forward.3} parent=1 // pred_check
      _
    $region3: #{conv_decoder_forward.3} parent=1 // pred_check_branch
      %11 = sbr.rel (0) target = $region5
    $region4: #{conv_decoder_forward.3} parent=1 // pred_region
      _
    $region5: #{conv_decoder_forward.3} parent=1 // pred_fallthru
      _
    // Predicated region
    $region6: #{conv_decoder_forward.3} parent=1 // pred_check
      _
    $region7: #{conv_decoder_forward.3} parent=1 // pred_check_branch
      %13 = sbr.rel (0) target = $region9
    $region8: #{conv_decoder_forward.3} parent=1 // pred_region
      _
    $region9: #{conv_decoder_forward.3} parent=1 // pred_fallthru
      _
    // Predicated region
    $region10: #{conv_decoder_forward.3} parent=1 // pred_check
      _
    $region11: #{conv_decoder_forward.3} parent=1 // pred_check_branch
      %15 = sbr.rel (0) target = $region13
    $region12: #{conv_decoder_forward.3} parent=1 // pred_region
      _
    $region13: #{conv_decoder_forward.3} parent=1 // pred_fallthru
      _
    // Predicated region
    $region14: #{conv_decoder_forward.3} parent=1 // pred_check
      _
    $region15: #{conv_decoder_forward.3} parent=1 // pred_check_branch
      %17 = sbr.rel (0) target = $region17
    $region16: #{conv_decoder_forward.3} parent=1 // pred_region
      %s19 = ssub.s32 32, 32
      %20 = vsyncadd [#allocation4], %s19
      %s22 = sshll.u32 [#allocation3], 4
      %s23 = int_to_ptr.vmem [resolvable:$true] %s22
      %25 = dma.hbm_to_vmem [thread:$0]  %s3, 32, %s23, [#allocation4]
    $region17: #{conv_decoder_forward.3} parent=1 // pred_fallthru
      _
    // Predicated region
    $region18: #{conv_decoder_forward.3} parent=1 // pred_check
      _
    $region19: #{conv_decoder_forward.3} parent=1 // pred_check_branch
      %27 = sbr.rel (0) target = $region21
    $region20: #{conv_decoder_forward.3} parent=1 // pred_region
      %28 = dma.done [#allocation4], 32
    $region21: #{conv_decoder_forward.3} parent=1 // pred_fallthru
      _
    %p29 = scmp.eq.s32.totalorder 0, 0
    // Predicated region
    $region22: #{conv_decoder_forward.3} parent=1 // pred_check
      %p30 = pneg %p29
    $region23: #{conv_decoder_forward.3} parent=1 // pred_check_branch
      %32 = sbr.rel (%p30) target = $region25
    $region24: #{conv_decoder_forward.3} parent=1 // pred_region
      %33 = vst [vmem:[#allocation2] sm:$0xff] 0.0
      %34 = vst [vmem:[#allocation2 + $0x8] sm:$0xff] 0.0
    $region25: #{conv_decoder_forward.3} parent=1 // pred_fallthru
      _
    %v35 = vld [vmem:[#allocation2] sm:$0xff]
    %v36 = vld [vmem:[#allocation2 + $0x8] sm:$0xff]
    %v37 = vld [vmem:[%s0] sm:$0xff]
    %v38 = vld [vmem:[%s1] sm:$0xff]
    %v39 = vld [vmem:[%s1 + $0x8] sm:$0xff]
    %v40 = vld [vmem:[%s1 + $0x10] sm:$0xff]
    %v41 = vld [vmem:[%s1 + $0x18] sm:$0xff]
    %v42 = vld [vmem:[%s1 + $0x20] sm:$0xff]
    %v43 = vld [vmem:[%s1 + $0x28] sm:$0xff]
    %v44 = vld [vmem:[%s1 + $0x30] sm:$0xff]
    %v45 = vld [vmem:[%s1 + $0x38] sm:$0xff]
    %v46 = vld [vmem:[%s1 + $0x40] sm:$0xff]
    %v47 = vld [vmem:[%s1 + $0x48] sm:$0xff]
    %v48 = vld [vmem:[%s1 + $0x50] sm:$0xff]
    %v49 = vld [vmem:[%s1 + $0x58] sm:$0xff]
    %v50 = vld [vmem:[%s1 + $0x60] sm:$0xff]
    %v51 = vld [vmem:[%s1 + $0x68] sm:$0xff]
    %v52 = vld [vmem:[%s1 + $0x70] sm:$0xff]
    %v53 = vld [vmem:[%s1 + $0x78] sm:$0xff]
    %v54 = vld [vmem:[%s1 + $0x80] sm:$0xff]
    %v55 = vld [vmem:[%s1 + $0x88] sm:$0xff]
    %v56 = vld [vmem:[%s1 + $0x90] sm:$0xff]
    %v57 = vld [vmem:[%s1 + $0x98] sm:$0xff]
    %v58 = vld [vmem:[%s1 + $0xa0] sm:$0xff]
    %v59 = vld [vmem:[%s1 + $0xa8] sm:$0xff]
    %v60 = vld [vmem:[%s1 + $0xb0] sm:$0xff]
    %v61 = vld [vmem:[%s1 + $0xb8] sm:$0xff]
    %v62 = vld [vmem:[%s1 + $0xc0] sm:$0xff]
    %v63 = vld [vmem:[%s1 + $0xc8] sm:$0xff]
    %v64 = vld [vmem:[%s1 + $0xd0] sm:$0xff]
    %v65 = vld [vmem:[%s1 + $0xd8] sm:$0xff]
    %v66 = vld [vmem:[%s1 + $0xe0] sm:$0xff]
    %v67 = vld [vmem:[%s1 + $0xe8] sm:$0xff]
    %v68 = vld [vmem:[%s1 + $0xf0] sm:$0xff]
    %v69 = vld [vmem:[%s1 + $0xf8] sm:$0xff]
    %70 = vmatprep.subr.mxu0 %v69
    %71 = vmatpush1.msra.mxu0 %v68
    %72 = vmatprep.subr.mxu0 %v67
    %73 = vmatpush1.msra.mxu0 %v66
    %74 = vmatprep.subr.mxu0 %v65
    %75 = vmatpush1.msra.mxu0 %v64
    %76 = vmatprep.subr.mxu0 %v63
    %77 = vmatpush1.msra.mxu0 %v62
    %78 = vmatprep.subr.mxu0 %v61
    %79 = vmatpush1.msra.mxu0 %v60
    %80 = vmatprep.subr.mxu0 %v59
    %81 = vmatpush1.msra.mxu0 %v58
    %82 = vmatprep.subr.mxu0 %v57
    %83 = vmatpush1.msra.mxu0 %v56
    %84 = vmatprep.subr.mxu0 %v55
    %85 = vmatpush1.msra.mxu0 %v54
    %86 = vmatprep.subr.mxu0 %v53
    %87 = vmatpush1.msra.mxu0 %v52
    %88 = vmatprep.subr.mxu0 %v51
    %89 = vmatpush1.msra.mxu0 %v50
    %90 = vmatprep.subr.mxu0 %v49
    %91 = vmatpush1.msra.mxu0 %v48
    %92 = vmatprep.subr.mxu0 %v47
    %93 = vmatpush1.msra.mxu0 %v46
    %94 = vmatprep.subr.mxu0 %v45
    %95 = vmatpush1.msra.mxu0 %v44
    %96 = vmatprep.subr.mxu0 %v43
    %97 = vmatpush1.msra.mxu0 %v42
    %98 = vmatprep.subr.mxu0 %v41
    %99 = vmatpush1.msra.mxu0 %v40
    %100 = vmatprep.subr.mxu0 %v39
    %101 = vmatpush1.msra.mxu0 %v38
    %102 = vmatprep.subr.mxu0 0.0
    %103 = vmatpush2.msra.mxu0 0.0
    %104 = vmatprep.subr.mxu0 0.0
    %105 = vmatpush2.msra.mxu0 0.0
    %106 = vmatprep.subr.mxu0 0.0
    %107 = vmatpush2.msra.mxu0 0.0
    %108 = vmatprep.subr.mxu0 0.0
    %109 = vmatpush2.msra.mxu0 0.0
    %110 = vmatprep.subr.mxu0 0.0
    %111 = vmatpush2.msra.mxu0 0.0
    %112 = vmatprep.subr.mxu0 0.0
    %113 = vmatpush2.msra.mxu0 0.0
    %114 = vmatprep.subr.mxu0 0.0
    %115 = vmatpush2.msra.mxu0 0.0
    %116 = vmatprep.subr.mxu0 0.0
    %117 = vmatpush2.msra.mxu0 0.0
    %118 = vmatprep.subr.mxu0 0.0
    %119 = vmatpush2.msra.mxu0 0.0
    %120 = vmatprep.subr.mxu0 0.0
    %121 = vmatpush2.msra.mxu0 0.0
    %122 = vmatprep.subr.mxu0 0.0
    %123 = vmatpush2.msra.mxu0 0.0
    %124 = vmatprep.subr.mxu0 0.0
    %125 = vmatpush2.msra.mxu0 0.0
    %126 = vmatprep.subr.mxu0 0.0
    %127 = vmatpush2.msra.mxu0 0.0
    %128 = vmatprep.subr.mxu0 0.0
    %129 = vmatpush2.msra.mxu0 0.0
    %130 = vmatprep.subr.mxu0 0.0
    %131 = vmatpush2.msra.mxu0 0.0
    %132 = vmatprep.subr.mxu0 0.0
    %133 = vmatpush2.msra.mxu0 0.0
    %134 = vmatprep.mubr.f32.mxu0 0.0
    %135 = vmatmul.mubr.f32.gmra.mxu0 %v37
    %v136 = vpop.f32.mrf.mxu0
    %v137 = vadd.f32 0.0, %v136
    %v138 = vpop.f32.mrf.mxu0
    %v139 = vadd.f32 0.0, %v138
    %140 = vdwg.mxu0
    %v141 = vadd.f32 %v35, %v137
    %v142 = vadd.f32 %v36, %v139
    %143 = vst [vmem:[#allocation2] sm:$0xff] %v141
    %144 = vst [vmem:[#allocation2 + $0x8] sm:$0xff] %v142
    // Predicated region
    $region26: #{conv_decoder_forward.3} parent=1 // pred_check
      %p145 = pneg %p29
    $region27: #{conv_decoder_forward.3} parent=1 // pred_check_branch
      %147 = sbr.rel (%p145) target = $region29
    $region28: #{conv_decoder_forward.3} parent=1 // pred_region
      %v148 = vld [vmem:[#allocation2] sm:$0xff]
      %v149 = vld [vmem:[#allocation2 + $0x8] sm:$0xff]
      %v150 = vld [vmem:[%s2] sm:$0x3]
      %v152 = vlaneseq
      %v153 = vshrl.u32 %v152, 7
      %v154 = vsub.s32 0, %v153
      %v155 = vrot.slane %v150, %v154
      %v156 = vlaneseq
      %v157 = vshrl.u32 %v156, 7
      %v158 = vsub.s32 1, %v157
      %v159 = vrot.slane %v150, %v158
      %v162 = vmul.f32 %v148, %v155
      %v163 = vmul.f32 %v149, %v159
      %v164 = vld [vmem:[#allocation3] sm:$0x3]
      %v166 = vlaneseq
      %v167 = vshrl.u32 %v166, 7
      %v168 = vsub.s32 0, %v167
      %v169 = vrot.slane %v164, %v168
      %v170 = vlaneseq
      %v171 = vshrl.u32 %v170, 7
      %v172 = vsub.s32 1, %v171
      %v173 = vrot.slane %v164, %v172
      %v176 = vadd.f32 %v162, %v169
      %v177 = vadd.f32 %v163, %v173
      %v178 = vmax.f32 %v176, 0.0
      %v179 = vmax.f32 %v177, 0.0
      %180 = vst [vmem:[%s4] sm:$0xff] %v178
      %181 = vst [vmem:[%s4 + $0x8] sm:$0xff] %v179
    $region29: #{conv_decoder_forward.3} parent=1 // pred_fallthru
      _
    // Predicated region
    $region30: #{conv_decoder_forward.3} parent=1 // pred_check
      _
    $region31: #{conv_decoder_forward.3} parent=1 // pred_check_branch
      %183 = sbr.rel (0) target = $region33
    $region32: #{conv_decoder_forward.3} parent=1 // pred_region
      _
    $region33: #{conv_decoder_forward.3} parent=1 // pred_fallthru
      _
    // Predicated region
    $region34: #{conv_decoder_forward.3} parent=1 // pred_check
      _
    $region35: #{conv_decoder_forward.3} parent=1 // pred_check_branch
      %185 = sbr.rel (0) target = $region37
    $region36: #{conv_decoder_forward.3} parent=1 // pred_region
      _
    $region37: #{conv_decoder_forward.3} parent=1 // pred_fallthru
      _
    %186 = vsyncpa [#allocation4], 1

// kernel: conv_decoder_forward.4
$region0: #{conv_decoder_forward.4}
  #allocation0 [shape = 'u32[]', space=smem, size = 0x4, offset = 0x4, fixed_abs, tag = 'smem constant byte address 0x4 - core index']
  #allocation1 [shape = 'u32[144,128]{1,0:T(1,128)}', space=vmem, size = 0x12000, scoped, tag = 'internal scratch']
  #allocation2 [shape = 'f32[128,128]{1,0:T(8,128)}', space=vmem, size = 0x10000, scoped, tag = 'scratch operand']
  %s0 = inlined_call_operand.vmem [shape: f32[128,256], index: 0, kind: input, shape index: {}]
  %s1 = inlined_call_operand.vmem [shape: f32[256,128], index: 1, kind: input, shape index: {}]
  %s2 = inlined_call_operand.vmem [shape: f32[1,128], index: 2, kind: input, shape index: {}]
  %s3 = inlined_call_operand.vmem [shape: f32[1,128], index: 3, kind: input, shape index: {}]
  %s4 = inlined_call_operand.vmem [shape: f32[128,128], index: 4, kind: output, shape index: {}]
  %s5 = sld [smem:[#allocation0]]
  $region34: #{conv_decoder_forward.4} parent=0
    _
  %s7 = ssub.s32 1, %s5
  %s8 = scalar_select 0, %s7, %s5
  // Predicated region
  $region2: #{conv_decoder_forward.4} parent=0 // pred_check
    _
  $region3: #{conv_decoder_forward.4} parent=0 // pred_check_branch
    %10 = sbr.rel (0) target = $region5
  $region4: #{conv_decoder_forward.4} parent=0 // pred_region
    _
  $region5: #{conv_decoder_forward.4} parent=0 // pred_fallthru
    _
  // Predicated region
  $region6: #{conv_decoder_forward.4} parent=0 // pred_check
    _
  $region7: #{conv_decoder_forward.4} parent=0 // pred_check_branch
    %12 = sbr.rel (0) target = $region9
  $region8: #{conv_decoder_forward.4} parent=0 // pred_region
    _
  $region9: #{conv_decoder_forward.4} parent=0 // pred_fallthru
    _
  // Predicated region
  $region10: #{conv_decoder_forward.4} parent=0 // pred_check
    _
  $region11: #{conv_decoder_forward.4} parent=0 // pred_check_branch
    %14 = sbr.rel (0) target = $region13
  $region12: #{conv_decoder_forward.4} parent=0 // pred_region
    _
  $region13: #{conv_decoder_forward.4} parent=0 // pred_fallthru
    _
  // Predicated region
  $region14: #{conv_decoder_forward.4} parent=0 // pred_check
    _
  $region15: #{conv_decoder_forward.4} parent=0 // pred_check_branch
    %16 = sbr.rel (0) target = $region17
  $region16: #{conv_decoder_forward.4} parent=0 // pred_region
    _
  $region17: #{conv_decoder_forward.4} parent=0 // pred_fallthru
    _
  %p17 = scmp.eq.s32.totalorder 0, 0
  // Predicated region
  $region18: #{conv_decoder_forward.4} parent=0 // pred_check
    %p18 = pneg %p17
  $region19: #{conv_decoder_forward.4} parent=0 // pred_check_branch
    %20 = sbr.rel (%p18) target = $region21
  $region20: #{conv_decoder_forward.4} parent=0 // pred_region
    %21 = vst [vmem:[#allocation2] sm:$0xff] 0.0
    %22 = vst [vmem:[#allocation2 + $0x8] sm:$0xff] 0.0
    %23 = vst [vmem:[#allocation2 + $0x10] sm:$0xff] 0.0
    %24 = vst [vmem:[#allocation2 + $0x18] sm:$0xff] 0.0
    %25 = vst [vmem:[#allocation2 + $0x20] sm:$0xff] 0.0
    %26 = vst [vmem:[#allocation2 + $0x28] sm:$0xff] 0.0
    %27 = vst [vmem:[#allocation2 + $0x30] sm:$0xff] 0.0
    %28 = vst [vmem:[#allocation2 + $0x38] sm:$0xff] 0.0
    %29 = vst [vmem:[#allocation2 + $0x40] sm:$0xff] 0.0
    %30 = vst [vmem:[#allocation2 + $0x48] sm:$0xff] 0.0
    %31 = vst [vmem:[#allocation2 + $0x50] sm:$0xff] 0.0
    %32 = vst [vmem:[#allocation2 + $0x58] sm:$0xff] 0.0
    %33 = vst [vmem:[#allocation2 + $0x60] sm:$0xff] 0.0
    %34 = vst [vmem:[#allocation2 + $0x68] sm:$0xff] 0.0
    %35 = vst [vmem:[#allocation2 + $0x70] sm:$0xff] 0.0
    %36 = vst [vmem:[#allocation2 + $0x78] sm:$0xff] 0.0
  $region21: #{conv_decoder_forward.4} parent=0 // pred_fallthru
    _
  %v37 = vld [vmem:[#allocation2] sm:$0xff]
  %v38 = vld [vmem:[#allocation2 + $0x8] sm:$0xff]
  %v39 = vld [vmem:[#allocation2 + $0x10] sm:$0xff]
  %v40 = vld [vmem:[#allocation2 + $0x18] sm:$0xff]
  %v41 = vld [vmem:[#allocation2 + $0x20] sm:$0xff]
  %v42 = vld [vmem:[#allocation2 + $0x28] sm:$0xff]
  %v43 = vld [vmem:[#allocation2 + $0x30] sm:$0xff]
  %v44 = vld [vmem:[#allocation2 + $0x38] sm:$0xff]
  %v45 = vld [vmem:[#allocation2 + $0x40] sm:$0xff]
  %v46 = vld [vmem:[#allocation2 + $0x48] sm:$0xff]
  %v47 = vld [vmem:[#allocation2 + $0x50] sm:$0xff]
  %v48 = vld [vmem:[#allocation2 + $0x58] sm:$0xff]
  %v49 = vld [vmem:[#allocation2 + $0x60] sm:$0xff]
  %v50 = vld [vmem:[#allocation2 + $0x68] sm:$0xff]
  %v51 = vld [vmem:[#allocation2 + $0x70] sm:$0xff]
  %v52 = vld [vmem:[#allocation2 + $0x78] sm:$0xff]
  %v53 = vld [vmem:[%s0] sm:$0xff]
  %v54 = vld [vmem:[%s0 + $0x8] sm:$0xff]
  %v55 = vld [vmem:[%s0 + $0x10] sm:$0xff]
  %v56 = vld [vmem:[%s0 + $0x18] sm:$0xff]
  %v57 = vld [vmem:[%s0 + $0x20] sm:$0xff]
  %v58 = vld [vmem:[%s0 + $0x28] sm:$0xff]
  %v59 = vld [vmem:[%s0 + $0x30] sm:$0xff]
  %v60 = vld [vmem:[%s0 + $0x38] sm:$0xff]
  %v61 = vld [vmem:[%s0 + $0x40] sm:$0xff]
  %v62 = vld [vmem:[%s0 + $0x48] sm:$0xff]
  %v63 = vld [vmem:[%s0 + $0x50] sm:$0xff]
  %v64 = vld [vmem:[%s0 + $0x58] sm:$0xff]
  %v65 = vld [vmem:[%s0 + $0x60] sm:$0xff]
  %v66 = vld [vmem:[%s0 + $0x68] sm:$0xff]
  %v67 = vld [vmem:[%s0 + $0x70] sm:$0xff]
  %v68 = vld [vmem:[%s0 + $0x78] sm:$0xff]
  %v69 = vld [vmem:[%s0 + $0x80] sm:$0xff]
  %v70 = vld [vmem:[%s0 + $0x88] sm:$0xff]
  %v71 = vld [vmem:[%s0 + $0x90] sm:$0xff]
  %v72 = vld [vmem:[%s0 + $0x98] sm:$0xff]
  %v73 = vld [vmem:[%s0 + $0xa0] sm:$0xff]
  %v74 = vld [vmem:[%s0 + $0xa8] sm:$0xff]
  %v75 = vld [vmem:[%s0 + $0xb0] sm:$0xff]
  %v76 = vld [vmem:[%s0 + $0xb8] sm:$0xff]
  %v77 = vld [vmem:[%s0 + $0xc0] sm:$0xff]
  %v78 = vld [vmem:[%s0 + $0xc8] sm:$0xff]
  %v79 = vld [vmem:[%s0 + $0xd0] sm:$0xff]
  %v80 = vld [vmem:[%s0 + $0xd8] sm:$0xff]
  %v81 = vld [vmem:[%s0 + $0xe0] sm:$0xff]
  %v82 = vld [vmem:[%s0 + $0xe8] sm:$0xff]
  %v83 = vld [vmem:[%s0 + $0xf0] sm:$0xff]
  %v84 = vld [vmem:[%s0 + $0xf8] sm:$0xff]
  %v85 = vld [vmem:[%s1] sm:$0xff]
  %v86 = vld [vmem:[%s1 + $0x8] sm:$0xff]
  %v87 = vld [vmem:[%s1 + $0x10] sm:$0xff]
  %v88 = vld [vmem:[%s1 + $0x18] sm:$0xff]
  %v89 = vld [vmem:[%s1 + $0x20] sm:$0xff]
  %v90 = vld [vmem:[%s1 + $0x28] sm:$0xff]
  %v91 = vld [vmem:[%s1 + $0x30] sm:$0xff]
  %v92 = vld [vmem:[%s1 + $0x38] sm:$0xff]
  %v93 = vld [vmem:[%s1 + $0x40] sm:$0xff]
  %v94 = vld [vmem:[%s1 + $0x48] sm:$0xff]
  %v95 = vld [vmem:[%s1 + $0x50] sm:$0xff]
  %v96 = vld [vmem:[%s1 + $0x58] sm:$0xff]
  %v97 = vld [vmem:[%s1 + $0x60] sm:$0xff]
  %v98 = vld [vmem:[%s1 + $0x68] sm:$0xff]
  %v99 = vld [vmem:[%s1 + $0x70] sm:$0xff]
  %v100 = vld [vmem:[%s1 + $0x78] sm:$0xff]
  %v101 = vld [vmem:[%s1 + $0x80] sm:$0xff]
  %v102 = vld [vmem:[%s1 + $0x88] sm:$0xff]
  %v103 = vld [vmem:[%s1 + $0x90] sm:$0xff]
  %v104 = vld [vmem:[%s1 + $0x98] sm:$0xff]
  %v105 = vld [vmem:[%s1 + $0xa0] sm:$0xff]
  %v106 = vld [vmem:[%s1 + $0xa8] sm:$0xff]
  %v107 = vld [vmem:[%s1 + $0xb0] sm:$0xff]
  %v108 = vld [vmem:[%s1 + $0xb8] sm:$0xff]
  %v109 = vld [vmem:[%s1 + $0xc0] sm:$0xff]
  %v110 = vld [vmem:[%s1 + $0xc8] sm:$0xff]
  %v111 = vld [vmem:[%s1 + $0xd0] sm:$0xff]
  %v112 = vld [vmem:[%s1 + $0xd8] sm:$0xff]
  %v113 = vld [vmem:[%s1 + $0xe0] sm:$0xff]
  %v114 = vld [vmem:[%s1 + $0xe8] sm:$0xff]
  %v115 = vld [vmem:[%s1 + $0xf0] sm:$0xff]
  %v116 = vld [vmem:[%s1 + $0xf8] sm:$0xff]
  %117 = vmatprep.subr.mxu0 0.0
  %118 = vmatpush1.msra.mxu0 %v100
  %119 = vmatprep.subr.mxu0 0.0
  %120 = vmatpush1.msra.mxu0 %v99
  %121 = vmatprep.subr.mxu0 0.0
  %122 = vmatpush1.msra.mxu0 %v98
  %123 = vmatprep.subr.mxu0 0.0
  %124 = vmatpush1.msra.mxu0 %v97
  %125 = vmatprep.subr.mxu0 0.0
  %126 = vmatpush1.msra.mxu0 %v96
  %127 = vmatprep.subr.mxu0 0.0
  %128 = vmatpush1.msra.mxu0 %v95
  %129 = vmatprep.subr.mxu0 0.0
  %130 = vmatpush1.msra.mxu0 %v94
  %131 = vmatprep.subr.mxu0 0.0
  %132 = vmatpush1.msra.mxu0 %v93
  %133 = vmatprep.subr.mxu0 0.0
  %134 = vmatpush1.msra.mxu0 %v92
  %135 = vmatprep.subr.mxu0 0.0
  %136 = vmatpush1.msra.mxu0 %v91
  %137 = vmatprep.subr.mxu0 0.0
  %138 = vmatpush1.msra.mxu0 %v90
  %139 = vmatprep.subr.mxu0 0.0
  %140 = vmatpush1.msra.mxu0 %v89
  %141 = vmatprep.subr.mxu0 0.0
  %142 = vmatpush1.msra.mxu0 %v88
  %143 = vmatprep.subr.mxu0 0.0
  %144 = vmatpush1.msra.mxu0 %v87
  %145 = vmatprep.subr.mxu0 0.0
  %146 = vmatpush1.msra.mxu0 %v86
  %147 = vmatprep.subr.mxu0 0.0
  %148 = vmatpush1.msra.mxu0 %v85
  %149 = vmatprep.subr.mxu0 0.0
  %150 = vmatpush2.msra.mxu0 %v116
  %151 = vmatprep.subr.mxu0 0.0
  %152 = vmatpush2.msra.mxu0 %v115
  %153 = vmatprep.subr.mxu0 0.0
  %154 = vmatpush2.msra.mxu0 %v114
  %155 = vmatprep.subr.mxu0 0.0
  %156 = vmatpush2.msra.mxu0 %v113
  %157 = vmatprep.subr.mxu0 0.0
  %158 = vmatpush2.msra.mxu0 %v112
  %159 = vmatprep.subr.mxu0 0.0
  %160 = vmatpush2.msra.mxu0 %v111
  %161 = vmatprep.subr.mxu0 0.0
  %162 = vmatpush2.msra.mxu0 %v110
  %163 = vmatprep.subr.mxu0 0.0
  %164 = vmatpush2.msra.mxu0 %v109
  %165 = vmatprep.subr.mxu0 0.0
  %166 = vmatpush2.msra.mxu0 %v108
  %167 = vmatprep.subr.mxu0 0.0
  %168 = vmatpush2.msra.mxu0 %v107
  %169 = vmatprep.subr.mxu0 0.0
  %170 = vmatpush2.msra.mxu0 %v106
  %171 = vmatprep.subr.mxu0 0.0
  %172 = vmatpush2.msra.mxu0 %v105
  %173 = vmatprep.subr.mxu0 0.0
  %174 = vmatpush2.msra.mxu0 %v104
  %175 = vmatprep.subr.mxu0 0.0
  %176 = vmatpush2.msra.mxu0 %v103
  %177 = vmatprep.subr.mxu0 0.0
  %178 = vmatpush2.msra.mxu0 %v102
  %179 = vmatprep.subr.mxu0 0.0
  %180 = vmatpush2.msra.mxu0 %v101
  %181 = vmatprep.mubr.f32.mxu0 %v54
  %182 = vmatmul.mubr.f32.gmra.mxu0 %v53
  %v183 = vpop.f32.mrf.mxu0
  %v184 = vadd.f32 0.0, %v183
  %v185 = vpop.f32.mrf.mxu0
  %186 = vmatprep.mubr.f32.mxu0 %v56
  %187 = vmatmul.mubr.f32.gmra.mxu0 %v55
  %v188 = vpop.f32.mrf.mxu0
  %v189 = vadd.f32 0.0, %v188
  %v190 = vpop.f32.mrf.mxu0
  %191 = vmatprep.mubr.f32.mxu0 %v58
  %192 = vmatmul.mubr.f32.gmra.mxu0 %v57
  %v193 = vpop.f32.mrf.mxu0
  %v194 = vadd.f32 0.0, %v193
  %v195 = vpop.f32.mrf.mxu0
  %196 = vmatprep.mubr.f32.mxu0 %v60
  %197 = vmatmul.mubr.f32.gmra.mxu0 %v59
  %v198 = vpop.f32.mrf.mxu0
  %v199 = vadd.f32 0.0, %v198
  %v200 = vpop.f32.mrf.mxu0
  %201 = vmatprep.mubr.f32.mxu0 %v62
  %202 = vmatmul.mubr.f32.gmra.mxu0 %v61
  %v203 = vpop.f32.mrf.mxu0
  %v204 = vadd.f32 0.0, %v203
  %v205 = vpop.f32.mrf.mxu0
  %206 = vmatprep.mubr.f32.mxu0 %v64
  %207 = vmatmul.mubr.f32.gmra.mxu0 %v63
  %v208 = vpop.f32.mrf.mxu0
  %v209 = vadd.f32 0.0, %v208
  %v210 = vpop.f32.mrf.mxu0
  %211 = vmatprep.mubr.f32.mxu0 %v66
  %212 = vmatmul.mubr.f32.gmra.mxu0 %v65
  %v213 = vpop.f32.mrf.mxu0
  %v214 = vadd.f32 0.0, %v213
  %v215 = vpop.f32.mrf.mxu0
  %216 = vmatprep.mubr.f32.mxu0 %v68
  %217 = vmatmul.mubr.f32.gmra.mxu0 %v67
  %v218 = vpop.f32.mrf.mxu0
  %v219 = vadd.f32 0.0, %v218
  %v220 = vpop.f32.mrf.mxu0
  %221 = vmatprep.mubr.f32.mxu0 %v70
  %222 = vmatmul.mubr.f32.gmra.mxu0 %v69
  %v223 = vpop.f32.mrf.mxu0
  %v224 = vadd.f32 0.0, %v223
  %v225 = vpop.f32.mrf.mxu0
  %226 = vmatprep.mubr.f32.mxu0 %v72
  %227 = vmatmul.mubr.f32.gmra.mxu0 %v71
  %v228 = vpop.f32.mrf.mxu0
  %v229 = vadd.f32 0.0, %v228
  %v230 = vpop.f32.mrf.mxu0
  %231 = vmatprep.mubr.f32.mxu0 %v74
  %232 = vmatmul.mubr.f32.gmra.mxu0 %v73
  %v233 = vpop.f32.mrf.mxu0
  %v234 = vadd.f32 0.0, %v233
  %v235 = vpop.f32.mrf.mxu0
  %236 = vmatprep.mubr.f32.mxu0 %v76
  %237 = vmatmul.mubr.f32.gmra.mxu0 %v75
  %v238 = vpop.f32.mrf.mxu0
  %v239 = vadd.f32 0.0, %v238
  %v240 = vpop.f32.mrf.mxu0
  %241 = vmatprep.mubr.f32.mxu0 %v78
  %242 = vmatmul.mubr.f32.gmra.mxu0 %v77
  %v243 = vpop.f32.mrf.mxu0
  %v244 = vadd.f32 0.0, %v243
  %v245 = vpop.f32.mrf.mxu0
  %246 = vmatprep.mubr.f32.mxu0 %v80
  %247 = vmatmul.mubr.f32.gmra.mxu0 %v79
  %v248 = vpop.f32.mrf.mxu0
  %v249 = vadd.f32 0.0, %v248
  %v250 = vpop.f32.mrf.mxu0
  %251 = vmatprep.mubr.f32.mxu0 %v82
  %252 = vmatmul.mubr.f32.gmra.mxu0 %v81
  %v253 = vpop.f32.mrf.mxu0
  %v254 = vadd.f32 0.0, %v253
  %v255 = vpop.f32.mrf.mxu0
  %256 = vmatprep.mubr.f32.mxu0 %v84
  %257 = vmatmul.mubr.f32.gmra.mxu0 %v83
  %v258 = vpop.f32.mrf.mxu0
  %v259 = vadd.f32 0.0, %v258
  %v260 = vpop.f32.mrf.mxu0
  %261 = vdwg.mxu0
  %v262 = vadd.f32 %v37, %v184
  %v263 = vadd.f32 %v38, %v189
  %v264 = vadd.f32 %v39, %v194
  %v265 = vadd.f32 %v40, %v199
  %v266 = vadd.f32 %v41, %v204
  %v267 = vadd.f32 %v42, %v209
  %v268 = vadd.f32 %v43, %v214
  %v269 = vadd.f32 %v44, %v219
  %v270 = vadd.f32 %v45, %v224
  %v271 = vadd.f32 %v46, %v229
  %v272 = vadd.f32 %v47, %v234
  %v273 = vadd.f32 %v48, %v239
  %v274 = vadd.f32 %v49, %v244
  %v275 = vadd.f32 %v50, %v249
  %v276 = vadd.f32 %v51, %v254
  %v277 = vadd.f32 %v52, %v259
  %278 = vst [vmem:[#allocation2] sm:$0xff] %v262
  %279 = vst [vmem:[#allocation2 + $0x8] sm:$0xff] %v263
  %280 = vst [vmem:[#allocation2 + $0x10] sm:$0xff] %v264
  %281 = vst [vmem:[#allocation2 + $0x18] sm:$0xff] %v265
  %282 = vst [vmem:[#allocation2 + $0x20] sm:$0xff] %v266
  %283 = vst [vmem:[#allocation2 + $0x28] sm:$0xff] %v267
  %284 = vst [vmem:[#allocation2 + $0x30] sm:$0xff] %v268
  %285 = vst [vmem:[#allocation2 + $0x38] sm:$0xff] %v269
  %286 = vst [vmem:[#allocation2 + $0x40] sm:$0xff] %v270
  %287 = vst [vmem:[#allocation2 + $0x48] sm:$0xff] %v271
  %288 = vst [vmem:[#allocation2 + $0x50] sm:$0xff] %v272
  %289 = vst [vmem:[#allocation2 + $0x58] sm:$0xff] %v273
  %290 = vst [vmem:[#allocation2 + $0x60] sm:$0xff] %v274
  %291 = vst [vmem:[#allocation2 + $0x68] sm:$0xff] %v275
  %292 = vst [vmem:[#allocation2 + $0x70] sm:$0xff] %v276
  %293 = vst [vmem:[#allocation2 + $0x78] sm:$0xff] %v277
  // Predicated region
  $region22: #{conv_decoder_forward.4} parent=0 // pred_check
    %p294 = pneg %p17
  $region23: #{conv_decoder_forward.4} parent=0 // pred_check_branch
    %296 = sbr.rel (%p294) target = $region25
  $region24: #{conv_decoder_forward.4} parent=0 // pred_region
    %v297 = vld [vmem:[#allocation2] sm:$0xff]
    %v298 = vld [vmem:[#allocation2 + $0x8] sm:$0xff]
    %v299 = vld [vmem:[#allocation2 + $0x10] sm:$0xff]
    %v300 = vld [vmem:[#allocation2 + $0x18] sm:$0xff]
    %v301 = vld [vmem:[#allocation2 + $0x20] sm:$0xff]
    %v302 = vld [vmem:[#allocation2 + $0x28] sm:$0xff]
    %v303 = vld [vmem:[#allocation2 + $0x30] sm:$0xff]
    %v304 = vld [vmem:[#allocation2 + $0x38] sm:$0xff]
    %v305 = vld [vmem:[#allocation2 + $0x40] sm:$0xff]
    %v306 = vld [vmem:[#allocation2 + $0x48] sm:$0xff]
    %v307 = vld [vmem:[#allocation2 + $0x50] sm:$0xff]
    %v308 = vld [vmem:[#allocation2 + $0x58] sm:$0xff]
    %v309 = vld [vmem:[#allocation2 + $0x60] sm:$0xff]
    %v310 = vld [vmem:[#allocation2 + $0x68] sm:$0xff]
    %v311 = vld [vmem:[#allocation2 + $0x70] sm:$0xff]
    %v312 = vld [vmem:[#allocation2 + $0x78] sm:$0xff]
    %v313 = vld [vmem:[%s2] sm:$0x1]
    %v315 = vlaneseq
    %v316 = vshrl.u32 %v315, 7
    %v317 = vsub.s32 0, %v316
    %v318 = vrot.slane %v313, %v317
    %v320 = vmul.f32 %v297, %v318
    %v321 = vmul.f32 %v298, %v318
    %v322 = vmul.f32 %v299, %v318
    %v323 = vmul.f32 %v300, %v318
    %v324 = vmul.f32 %v301, %v318
    %v325 = vmul.f32 %v302, %v318
    %v326 = vmul.f32 %v303, %v318
    %v327 = vmul.f32 %v304, %v318
    %v328 = vmul.f32 %v305, %v318
    %v329 = vmul.f32 %v306, %v318
    %v330 = vmul.f32 %v307, %v318
    %v331 = vmul.f32 %v308, %v318
    %v332 = vmul.f32 %v309, %v318
    %v333 = vmul.f32 %v310, %v318
    %v334 = vmul.f32 %v311, %v318
    %v335 = vmul.f32 %v312, %v318
    %v336 = vld [vmem:[%s3] sm:$0x1]
    %v338 = vlaneseq
    %v339 = vshrl.u32 %v338, 7
    %v340 = vsub.s32 0, %v339
    %v341 = vrot.slane %v336, %v340
    %v343 = vadd.f32 %v320, %v341
    %v344 = vadd.f32 %v321, %v341
    %v345 = vadd.f32 %v322, %v341
    %v346 = vadd.f32 %v323, %v341
    %v347 = vadd.f32 %v324, %v341
    %v348 = vadd.f32 %v325, %v341
    %v349 = vadd.f32 %v326, %v341
    %v350 = vadd.f32 %v327, %v341
    %v351 = vadd.f32 %v328, %v341
    %v352 = vadd.f32 %v329, %v341
    %v353 = vadd.f32 %v330, %v341
    %v354 = vadd.f32 %v331, %v341
    %v355 = vadd.f32 %v332, %v341
    %v356 = vadd.f32 %v333, %v341
    %v357 = vadd.f32 %v334, %v341
    %v358 = vadd.f32 %v335, %v341
    %vm359 = vcmp.ge.f32.partialorder %v343, 0.0
    %vm360 = vcmp.ge.f32.partialorder %v344, 0.0
    %vm361 = vcmp.ge.f32.partialorder %v345, 0.0
    %vm362 = vcmp.ge.f32.partialorder %v346, 0.0
    %vm363 = vcmp.ge.f32.partialorder %v347, 0.0
    %vm364 = vcmp.ge.f32.partialorder %v348, 0.0
    %vm365 = vcmp.ge.f32.partialorder %v349, 0.0
    %vm366 = vcmp.ge.f32.partialorder %v350, 0.0
    %vm367 = vcmp.ge.f32.partialorder %v351, 0.0
    %vm368 = vcmp.ge.f32.partialorder %v352, 0.0
    %vm369 = vcmp.ge.f32.partialorder %v353, 0.0
    %vm370 = vcmp.ge.f32.partialorder %v354, 0.0
    %vm371 = vcmp.ge.f32.partialorder %v355, 0.0
    %vm372 = vcmp.ge.f32.partialorder %v356, 0.0
    %vm373 = vcmp.ge.f32.partialorder %v357, 0.0
    %vm374 = vcmp.ge.f32.partialorder %v358, 0.0
    %v375 = vmul.f32 %v343, 0.01
    %v376 = vmul.f32 %v344, 0.01
    %v377 = vmul.f32 %v345, 0.01
    %v378 = vmul.f32 %v346, 0.01
    %v379 = vmul.f32 %v347, 0.01
    %v380 = vmul.f32 %v348, 0.01
    %v381 = vmul.f32 %v349, 0.01
    %v382 = vmul.f32 %v350, 0.01
    %v383 = vmul.f32 %v351, 0.01
    %v384 = vmul.f32 %v352, 0.01
    %v385 = vmul.f32 %v353, 0.01
    %v386 = vmul.f32 %v354, 0.01
    %v387 = vmul.f32 %v355, 0.01
    %v388 = vmul.f32 %v356, 0.01
    %v389 = vmul.f32 %v357, 0.01
    %v390 = vmul.f32 %v358, 0.01
    %v391 = vsel %vm359, %v343, %v375
    %v392 = vsel %vm360, %v344, %v376
    %v393 = vsel %vm361, %v345, %v377
    %v394 = vsel %vm362, %v346, %v378
    %v395 = vsel %vm363, %v347, %v379
    %v396 = vsel %vm364, %v348, %v380
    %v397 = vsel %vm365, %v349, %v381
    %v398 = vsel %vm366, %v350, %v382
    %v399 = vsel %vm367, %v351, %v383
    %v400 = vsel %vm368, %v352, %v384
    %v401 = vsel %vm369, %v353, %v385
    %v402 = vsel %vm370, %v354, %v386
    %v403 = vsel %vm371, %v355, %v387
    %v404 = vsel %vm372, %v356, %v388
    %v405 = vsel %vm373, %v357, %v389
    %v406 = vsel %vm374, %v358, %v390
    %407 = vst [vmem:[%s4] sm:$0xff] %v391
    %408 = vst [vmem:[%s4 + $0x8] sm:$0xff] %v392
    %409 = vst [vmem:[%s4 + $0x10] sm:$0xff] %v393
    %410 = vst [vmem:[%s4 + $0x18] sm:$0xff] %v394
    %411 = vst [vmem:[%s4 + $0x20] sm:$0xff] %v395
    %412 = vst [vmem:[%s4 + $0x28] sm:$0xff] %v396
    %413 = vst [vmem:[%s4 + $0x30] sm:$0xff] %v397
    %414 = vst [vmem:[%s4 + $0x38] sm:$0xff] %v398
    %415 = vst [vmem:[%s4 + $0x40] sm:$0xff] %v399
    %416 = vst [vmem:[%s4 + $0x48] sm:$0xff] %v400
    %417 = vst [vmem:[%s4 + $0x50] sm:$0xff] %v401
    %418 = vst [vmem:[%s4 + $0x58] sm:$0xff] %v402
    %419 = vst [vmem:[%s4 + $0x60] sm:$0xff] %v403
    %420 = vst [vmem:[%s4 + $0x68] sm:$0xff] %v404
    %421 = vst [vmem:[%s4 + $0x70] sm:$0xff] %v405
    %422 = vst [vmem:[%s4 + $0x78] sm:$0xff] %v406
  $region25: #{conv_decoder_forward.4} parent=0 // pred_fallthru
    _
  // Predicated region
  $region26: #{conv_decoder_forward.4} parent=0 // pred_check
    _
  $region27: #{conv_decoder_forward.4} parent=0 // pred_check_branch
    %424 = sbr.rel (0) target = $region29
  $region28: #{conv_decoder_forward.4} parent=0 // pred_region
    _
  $region29: #{conv_decoder_forward.4} parent=0 // pred_fallthru
    _
  // Predicated region
  $region30: #{conv_decoder_forward.4} parent=0 // pred_check
    _
  $region31: #{conv_decoder_forward.4} parent=0 // pred_check_branch
    %426 = sbr.rel (0) target = $region33
  $region32: #{conv_decoder_forward.4} parent=0 // pred_region
    _
  $region33: #{conv_decoder_forward.4} parent=0 // pred_fallthru
    _

// kernel: conv_decoder_forward.5
$region0: #{conv_decoder_forward.5}
  #allocation0 [shape = 'u32[]', space=smem, size = 0x4, offset = 0x4, fixed_abs, tag = 'smem constant byte address 0x4 - core index']
  #allocation1 [shape = 'u32[144,128]{1,0:T(1,128)}', space=vmem, size = 0x12000, scoped, tag = 'internal scratch']
  #allocation2 [shape = 'f32[512,128]{1,0:T(8,128)}', space=vmem, size = 0x40000, scoped, tag = 'scratch operand']
  %s0 = inlined_call_operand.vmem [shape: f32[512,128], index: 0, kind: input, shape index: {}]
  %s1 = inlined_call_operand.vmem [shape: f32[128,128], index: 1, kind: input, shape index: {}]
  %s2 = inlined_call_operand.vmem [shape: f32[1,128], index: 2, kind: input, shape index: {}]
  %s3 = inlined_call_operand.vmem [shape: f32[1,128], index: 3, kind: input, shape index: {}]
  %s4 = inlined_call_operand.vmem [shape: f32[512,128], index: 4, kind: output, shape index: {}]
  %s5 = sld [smem:[#allocation0]]
  $region34: #{conv_decoder_forward.5} parent=0
    _
  %s7 = ssub.s32 1, %s5
  %s8 = scalar_select 0, %s7, %s5
  // Predicated region
  $region2: #{conv_decoder_forward.5} parent=0 // pred_check
    _
  $region3: #{conv_decoder_forward.5} parent=0 // pred_check_branch
    %10 = sbr.rel (0) target = $region5
  $region4: #{conv_decoder_forward.5} parent=0 // pred_region
    _
  $region5: #{conv_decoder_forward.5} parent=0 // pred_fallthru
    _
  // Predicated region
  $region6: #{conv_decoder_forward.5} parent=0 // pred_check
    _
  $region7: #{conv_decoder_forward.5} parent=0 // pred_check_branch
    %12 = sbr.rel (0) target = $region9
  $region8: #{conv_decoder_forward.5} parent=0 // pred_region
    _
  $region9: #{conv_decoder_forward.5} parent=0 // pred_fallthru
    _
  // Predicated region
  $region10: #{conv_decoder_forward.5} parent=0 // pred_check
    _
  $region11: #{conv_decoder_forward.5} parent=0 // pred_check_branch
    %14 = sbr.rel (0) target = $region13
  $region12: #{conv_decoder_forward.5} parent=0 // pred_region
    _
  $region13: #{conv_decoder_forward.5} parent=0 // pred_fallthru
    _
  // Predicated region
  $region14: #{conv_decoder_forward.5} parent=0 // pred_check
    _
  $region15: #{conv_decoder_forward.5} parent=0 // pred_check_branch
    %16 = sbr.rel (0) target = $region17
  $region16: #{conv_decoder_forward.5} parent=0 // pred_region
    _
  $region17: #{conv_decoder_forward.5} parent=0 // pred_fallthru
    _
  %p17 = scmp.eq.s32.totalorder 0, 0
  // Predicated region
  $region18: #{conv_decoder_forward.5} parent=0 // pred_check
    %p18 = pneg %p17
  $region19: #{conv_decoder_forward.5} parent=0 // pred_check_branch
    %20 = sbr.rel (%p18) target = $region21
  $region20: #{conv_decoder_forward.5} parent=0 // pred_region
    %21 = vst [vmem:[#allocation2] sm:$0xff] 0.0
    %22 = vst [vmem:[#allocation2 + $0x8] sm:$0xff] 0.0
    %23 = vst [vmem:[#allocation2 + $0x10] sm:$0xff] 0.0
    %24 = vst [vmem:[#allocation2 + $0x18] sm:$0xff] 0.0
    %25 = vst [vmem:[#allocation2 + $0x20] sm:$0xff] 0.0
    %26 = vst [vmem:[#allocation2 + $0x28] sm:$0xff] 0.0
    %27 = vst [vmem:[#allocation2 + $0x30] sm:$0xff] 0.0
    %28 = vst [vmem:[#allocation2 + $0x38] sm:$0xff] 0.0
    %29 = vst [vmem:[#allocation2 + $0x40] sm:$0xff] 0.0
    %30 = vst [vmem:[#allocation2 + $0x48] sm:$0xff] 0.0
    %31 = vst [vmem:[#allocation2 + $0x50] sm:$0xff] 0.0
    %32 = vst [vmem:[#allocation2 + $0x58] sm:$0xff] 0.0
    %33 = vst [vmem:[#allocation2 + $0x60] sm:$0xff] 0.0
    %34 = vst [vmem:[#allocation2 + $0x68] sm:$0xff] 0.0
    %35 = vst [vmem:[#allocation2 + $0x70] sm:$0xff] 0.0
    %36 = vst [vmem:[#allocation2 + $0x78] sm:$0xff] 0.0
    %37 = vst [vmem:[#allocation2 + $0x80] sm:$0xff] 0.0
    %38 = vst [vmem:[#allocation2 + $0x88] sm:$0xff] 0.0
    %39 = vst [vmem:[#allocation2 + $0x90] sm:$0xff] 0.0
    %40 = vst [vmem:[#allocation2 + $0x98] sm:$0xff] 0.0
    %41 = vst [vmem:[#allocation2 + $0xa0] sm:$0xff] 0.0
    %42 = vst [vmem:[#allocation2 + $0xa8] sm:$0xff] 0.0
    %43 = vst [vmem:[#allocation2 + $0xb0] sm:$0xff] 0.0
    %44 = vst [vmem:[#allocation2 + $0xb8] sm:$0xff] 0.0
    %45 = vst [vmem:[#allocation2 + $0xc0] sm:$0xff] 0.0
    %46 = vst [vmem:[#allocation2 + $0xc8] sm:$0xff] 0.0
    %47 = vst [vmem:[#allocation2 + $0xd0] sm:$0xff] 0.0
    %48 = vst [vmem:[#allocation2 + $0xd8] sm:$0xff] 0.0
    %49 = vst [vmem:[#allocation2 + $0xe0] sm:$0xff] 0.0
    %50 = vst [vmem:[#allocation2 + $0xe8] sm:$0xff] 0.0
    %51 = vst [vmem:[#allocation2 + $0xf0] sm:$0xff] 0.0
    %52 = vst [vmem:[#allocation2 + $0xf8] sm:$0xff] 0.0
    %53 = vst [vmem:[#allocation2 + $0x100] sm:$0xff] 0.0
    %54 = vst [vmem:[#allocation2 + $0x108] sm:$0xff] 0.0
    %55 = vst [vmem:[#allocation2 + $0x110] sm:$0xff] 0.0
    %56 = vst [vmem:[#allocation2 + $0x118] sm:$0xff] 0.0
    %57 = vst [vmem:[#allocation2 + $0x120] sm:$0xff] 0.0
    %58 = vst [vmem:[#allocation2 + $0x128] sm:$0xff] 0.0
    %59 = vst [vmem:[#allocation2 + $0x130] sm:$0xff] 0.0
    %60 = vst [vmem:[#allocation2 + $0x138] sm:$0xff] 0.0
    %61 = vst [vmem:[#allocation2 + $0x140] sm:$0xff] 0.0
    %62 = vst [vmem:[#allocation2 + $0x148] sm:$0xff] 0.0
    %63 = vst [vmem:[#allocation2 + $0x150] sm:$0xff] 0.0
    %64 = vst [vmem:[#allocation2 + $0x158] sm:$0xff] 0.0
    %65 = vst [vmem:[#allocation2 + $0x160] sm:$0xff] 0.0
    %66 = vst [vmem:[#allocation2 + $0x168] sm:$0xff] 0.0
    %67 = vst [vmem:[#allocation2 + $0x170] sm:$0xff] 0.0
    %68 = vst [vmem:[#allocation2 + $0x178] sm:$0xff] 0.0
    %69 = vst [vmem:[#allocation2 + $0x180] sm:$0xff] 0.0
    %70 = vst [vmem:[#allocation2 + $0x188] sm:$0xff] 0.0
    %71 = vst [vmem:[#allocation2 + $0x190] sm:$0xff] 0.0
    %72 = vst [vmem:[#allocation2 + $0x198] sm:$0xff] 0.0
    %73 = vst [vmem:[#allocation2 + $0x1a0] sm:$0xff] 0.0
    %74 = vst [vmem:[#allocation2 + $0x1a8] sm:$0xff] 0.0
    %75 = vst [vmem:[#allocation2 + $0x1b0] sm:$0xff] 0.0
    %76 = vst [vmem:[#allocation2 + $0x1b8] sm:$0xff] 0.0
    %77 = vst [vmem:[#allocation2 + $0x1c0] sm:$0xff] 0.0
    %78 = vst [vmem:[#allocation2 + $0x1c8] sm:$0xff] 0.0
    %79 = vst [vmem:[#allocation2 + $0x1d0] sm:$0xff] 0.0
    %80 = vst [vmem:[#allocation2 + $0x1d8] sm:$0xff] 0.0
    %81 = vst [vmem:[#allocation2 + $0x1e0] sm:$0xff] 0.0
    %82 = vst [vmem:[#allocation2 + $0x1e8] sm:$0xff] 0.0
    %83 = vst [vmem:[#allocation2 + $0x1f0] sm:$0xff] 0.0
    %84 = vst [vmem:[#allocation2 + $0x1f8] sm:$0xff] 0.0
  $region21: #{conv_decoder_forward.5} parent=0 // pred_fallthru
    _
  %v85 = vld [vmem:[#allocation2] sm:$0xff]
  %v86 = vld [vmem:[#allocation2 + $0x8] sm:$0xff]
  %v87 = vld [vmem:[#allocation2 + $0x10] sm:$0xff]
  %v88 = vld [vmem:[#allocation2 + $0x18] sm:$0xff]
  %v89 = vld [vmem:[#allocation2 + $0x20] sm:$0xff]
  %v90 = vld [vmem:[#allocation2 + $0x28] sm:$0xff]
  %v91 = vld [vmem:[#allocation2 + $0x30] sm:$0xff]
  %v92 = vld [vmem:[#allocation2 + $0x38] sm:$0xff]
  %v93 = vld [vmem:[#allocation2 + $0x40] sm:$0xff]
  %v94 = vld [vmem:[#allocation2 + $0x48] sm:$0xff]
  %v95 = vld [vmem:[#allocation2 + $0x50] sm:$0xff]
  %v96 = vld [vmem:[#allocation2 + $0x58] sm:$0xff]
  %v97 = vld [vmem:[#allocation2 + $0x60] sm:$0xff]
  %v98 = vld [vmem:[#allocation2 + $0x68] sm:$0xff]
  %v99 = vld [vmem:[#allocation2 + $0x70] sm:$0xff]
  %v100 = vld [vmem:[#allocation2 + $0x78] sm:$0xff]
  %v101 = vld [vmem:[#allocation2 + $0x80] sm:$0xff]
  %v102 = vld [vmem:[#allocation2 + $0x88] sm:$0xff]
  %v103 = vld [vmem:[#allocation2 + $0x90] sm:$0xff]
  %v104 = vld [vmem:[#allocation2 + $0x98] sm:$0xff]
  %v105 = vld [vmem:[#allocation2 + $0xa0] sm:$0xff]
  %v106 = vld [vmem:[#allocation2 + $0xa8] sm:$0xff]
  %v107 = vld [vmem:[#allocation2 + $0xb0] sm:$0xff]
  %v108 = vld [vmem:[#allocation2 + $0xb8] sm:$0xff]
  %v109 = vld [vmem:[#allocation2 + $0xc0] sm:$0xff]
  %v110 = vld [vmem:[#allocation2 + $0xc8] sm:$0xff]
  %v111 = vld [vmem:[#allocation2 + $0xd0] sm:$0xff]
  %v112 = vld [vmem:[#allocation2 + $0xd8] sm:$0xff]
  %v113 = vld [vmem:[#allocation2 + $0xe0] sm:$0xff]
  %v114 = vld [vmem:[#allocation2 + $0xe8] sm:$0xff]
  %v115 = vld [vmem:[#allocation2 + $0xf0] sm:$0xff]
  %v116 = vld [vmem:[#allocation2 + $0xf8] sm:$0xff]
  %v117 = vld [vmem:[#allocation2 + $0x100] sm:$0xff]
  %v118 = vld [vmem:[#allocation2 + $0x108] sm:$0xff]
  %v119 = vld [vmem:[#allocation2 + $0x110] sm:$0xff]
  %v120 = vld [vmem:[#allocation2 + $0x118] sm:$0xff]
  %v121 = vld [vmem:[#allocation2 + $0x120] sm:$0xff]
  %v122 = vld [vmem:[#allocation2 + $0x128] sm:$0xff]
  %v123 = vld [vmem:[#allocation2 + $0x130] sm:$0xff]
  %v124 = vld [vmem:[#allocation2 + $0x138] sm:$0xff]
  %v125 = vld [vmem:[#allocation2 + $0x140] sm:$0xff]
  %v126 = vld [vmem:[#allocation2 + $0x148] sm:$0xff]
  %v127 = vld [vmem:[#allocation2 + $0x150] sm:$0xff]
  %v128 = vld [vmem:[#allocation2 + $0x158] sm:$0xff]
  %v129 = vld [vmem:[#allocation2 + $0x160] sm:$0xff]
  %v130 = vld [vmem:[#allocation2 + $0x168] sm:$0xff]
  %v131 = vld [vmem:[#allocation2 + $0x170] sm:$0xff]
  %v132 = vld [vmem:[#allocation2 + $0x178] sm:$0xff]
  %v133 = vld [vmem:[#allocation2 + $0x180] sm:$0xff]
  %v134 = vld [vmem:[#allocation2 + $0x188] sm:$0xff]
  %v135 = vld [vmem:[#allocation2 + $0x190] sm:$0xff]
  %v136 = vld [vmem:[#allocation2 + $0x198] sm:$0xff]
  %v137 = vld [vmem:[#allocation2 + $0x1a0] sm:$0xff]
  %v138 = vld [vmem:[#allocation2 + $0x1a8] sm:$0xff]
  %v139 = vld [vmem:[#allocation2 + $0x1b0] sm:$0xff]
  %v140 = vld [vmem:[#allocation2 + $0x1b8] sm:$0xff]
  %v141 = vld [vmem:[#allocation2 + $0x1c0] sm:$0xff]
  %v142 = vld [vmem:[#allocation2 + $0x1c8] sm:$0xff]
  %v143 = vld [vmem:[#allocation2 + $0x1d0] sm:$0xff]
  %v144 = vld [vmem:[#allocation2 + $0x1d8] sm:$0xff]
  %v145 = vld [vmem:[#allocation2 + $0x1e0] sm:$0xff]
  %v146 = vld [vmem:[#allocation2 + $0x1e8] sm:$0xff]
  %v147 = vld [vmem:[#allocation2 + $0x1f0] sm:$0xff]
  %v148 = vld [vmem:[#allocation2 + $0x1f8] sm:$0xff]
  %v149 = vld [vmem:[%s0] sm:$0xff]
  %v150 = vld [vmem:[%s0 + $0x8] sm:$0xff]
  %v151 = vld [vmem:[%s0 + $0x10] sm:$0xff]
  %v152 = vld [vmem:[%s0 + $0x18] sm:$0xff]
  %v153 = vld [vmem:[%s0 + $0x20] sm:$0xff]
  %v154 = vld [vmem:[%s0 + $0x28] sm:$0xff]
  %v155 = vld [vmem:[%s0 + $0x30] sm:$0xff]
  %v156 = vld [vmem:[%s0 + $0x38] sm:$0xff]
  %v157 = vld [vmem:[%s0 + $0x40] sm:$0xff]
  %v158 = vld [vmem:[%s0 + $0x48] sm:$0xff]
  %v159 = vld [vmem:[%s0 + $0x50] sm:$0xff]
  %v160 = vld [vmem:[%s0 + $0x58] sm:$0xff]
  %v161 = vld [vmem:[%s0 + $0x60] sm:$0xff]
  %v162 = vld [vmem:[%s0 + $0x68] sm:$0xff]
  %v163 = vld [vmem:[%s0 + $0x70] sm:$0xff]
  %v164 = vld [vmem:[%s0 + $0x78] sm:$0xff]
  %v165 = vld [vmem:[%s0 + $0x80] sm:$0xff]
  %v166 = vld [vmem:[%s0 + $0x88] sm:$0xff]
  %v167 = vld [vmem:[%s0 + $0x90] sm:$0xff]
  %v168 = vld [vmem:[%s0 + $0x98] sm:$0xff]
  %v169 = vld [vmem:[%s0 + $0xa0] sm:$0xff]
  %v170 = vld [vmem:[%s0 + $0xa8] sm:$0xff]
  %v171 = vld [vmem:[%s0 + $0xb0] sm:$0xff]
  %v172 = vld [vmem:[%s0 + $0xb8] sm:$0xff]
  %v173 = vld [vmem:[%s0 + $0xc0] sm:$0xff]
  %v174 = vld [vmem:[%s0 + $0xc8] sm:$0xff]
  %v175 = vld [vmem:[%s0 + $0xd0] sm:$0xff]
  %v176 = vld [vmem:[%s0 + $0xd8] sm:$0xff]
  %v177 = vld [vmem:[%s0 + $0xe0] sm:$0xff]
  %v178 = vld [vmem:[%s0 + $0xe8] sm:$0xff]
  %v179 = vld [vmem:[%s0 + $0xf0] sm:$0xff]
  %v180 = vld [vmem:[%s0 + $0xf8] sm:$0xff]
  %v181 = vld [vmem:[%s0 + $0x100] sm:$0xff]
  %v182 = vld [vmem:[%s0 + $0x108] sm:$0xff]
  %v183 = vld [vmem:[%s0 + $0x110] sm:$0xff]
  %v184 = vld [vmem:[%s0 + $0x118] sm:$0xff]
  %v185 = vld [vmem:[%s0 + $0x120] sm:$0xff]
  %v186 = vld [vmem:[%s0 + $0x128] sm:$0xff]
  %v187 = vld [vmem:[%s0 + $0x130] sm:$0xff]
  %v188 = vld [vmem:[%s0 + $0x138] sm:$0xff]
  %v189 = vld [vmem:[%s0 + $0x140] sm:$0xff]
  %v190 = vld [vmem:[%s0 + $0x148] sm:$0xff]
  %v191 = vld [vmem:[%s0 + $0x150] sm:$0xff]
  %v192 = vld [vmem:[%s0 + $0x158] sm:$0xff]
  %v193 = vld [vmem:[%s0 + $0x160] sm:$0xff]
  %v194 = vld [vmem:[%s0 + $0x168] sm:$0xff]
  %v195 = vld [vmem:[%s0 + $0x170] sm:$0xff]
  %v196 = vld [vmem:[%s0 + $0x178] sm:$0xff]
  %v197 = vld [vmem:[%s0 + $0x180] sm:$0xff]
  %v198 = vld [vmem:[%s0 + $0x188] sm:$0xff]
  %v199 = vld [vmem:[%s0 + $0x190] sm:$0xff]
  %v200 = vld [vmem:[%s0 + $0x198] sm:$0xff]
  %v201 = vld [vmem:[%s0 + $0x1a0] sm:$0xff]
  %v202 = vld [vmem:[%s0 + $0x1a8] sm:$0xff]
  %v203 = vld [vmem:[%s0 + $0x1b0] sm:$0xff]
  %v204 = vld [vmem:[%s0 + $0x1b8] sm:$0xff]
  %v205 = vld [vmem:[%s0 + $0x1c0] sm:$0xff]
  %v206 = vld [vmem:[%s0 + $0x1c8] sm:$0xff]
  %v207 = vld [vmem:[%s0 + $0x1d0] sm:$0xff]
  %v208 = vld [vmem:[%s0 + $0x1d8] sm:$0xff]
  %v209 = vld [vmem:[%s0 + $0x1e0] sm:$0xff]
  %v210 = vld [vmem:[%s0 + $0x1e8] sm:$0xff]
  %v211 = vld [vmem:[%s0 + $0x1f0] sm:$0xff]
  %v212 = vld [vmem:[%s0 + $0x1f8] sm:$0xff]
  %v213 = vld [vmem:[%s1] sm:$0xff]
  %v214 = vld [vmem:[%s1 + $0x8] sm:$0xff]
  %v215 = vld [vmem:[%s1 + $0x10] sm:$0xff]
  %v216 = vld [vmem:[%s1 + $0x18] sm:$0xff]
  %v217 = vld [vmem:[%s1 + $0x20] sm:$0xff]
  %v218 = vld [vmem:[%s1 + $0x28] sm:$0xff]
  %v219 = vld [vmem:[%s1 + $0x30] sm:$0xff]
  %v220 = vld [vmem:[%s1 + $0x38] sm:$0xff]
  %v221 = vld [vmem:[%s1 + $0x40] sm:$0xff]
  %v222 = vld [vmem:[%s1 + $0x48] sm:$0xff]
  %v223 = vld [vmem:[%s1 + $0x50] sm:$0xff]
  %v224 = vld [vmem:[%s1 + $0x58] sm:$0xff]
  %v225 = vld [vmem:[%s1 + $0x60] sm:$0xff]
  %v226 = vld [vmem:[%s1 + $0x68] sm:$0xff]
  %v227 = vld [vmem:[%s1 + $0x70] sm:$0xff]
  %v228 = vld [vmem:[%s1 + $0x78] sm:$0xff]
  %229 = vmatprep.subr.mxu0 0.0
  %230 = vmatpush1.msra.mxu0 %v228
  %231 = vmatprep.subr.mxu0 0.0
  %232 = vmatpush1.msra.mxu0 %v227
  %233 = vmatprep.subr.mxu0 0.0
  %234 = vmatpush1.msra.mxu0 %v226
  %235 = vmatprep.subr.mxu0 0.0
  %236 = vmatpush1.msra.mxu0 %v225
  %237 = vmatprep.subr.mxu0 0.0
  %238 = vmatpush1.msra.mxu0 %v224
  %239 = vmatprep.subr.mxu0 0.0
  %240 = vmatpush1.msra.mxu0 %v223
  %241 = vmatprep.subr.mxu0 0.0
  %242 = vmatpush1.msra.mxu0 %v222
  %243 = vmatprep.subr.mxu0 0.0
  %244 = vmatpush1.msra.mxu0 %v221
  %245 = vmatprep.subr.mxu0 0.0
  %246 = vmatpush1.msra.mxu0 %v220
  %247 = vmatprep.subr.mxu0 0.0
  %248 = vmatpush1.msra.mxu0 %v219
  %249 = vmatprep.subr.mxu0 0.0
  %250 = vmatpush1.msra.mxu0 %v218
  %251 = vmatprep.subr.mxu0 0.0
  %252 = vmatpush1.msra.mxu0 %v217
  %253 = vmatprep.subr.mxu0 0.0
  %254 = vmatpush1.msra.mxu0 %v216
  %255 = vmatprep.subr.mxu0 0.0
  %256 = vmatpush1.msra.mxu0 %v215
  %257 = vmatprep.subr.mxu0 0.0
  %258 = vmatpush1.msra.mxu0 %v214
  %259 = vmatprep.subr.mxu0 0.0
  %260 = vmatpush1.msra.mxu0 %v213
  %261 = vmatprep.subr.mxu0 0.0
  %262 = vmatpush2.msra.mxu0 0.0
  %263 = vmatprep.subr.mxu0 0.0
  %264 = vmatpush2.msra.mxu0 0.0
  %265 = vmatprep.subr.mxu0 0.0
  %266 = vmatpush2.msra.mxu0 0.0
  %267 = vmatprep.subr.mxu0 0.0
  %268 = vmatpush2.msra.mxu0 0.0
  %269 = vmatprep.subr.mxu0 0.0
  %270 = vmatpush2.msra.mxu0 0.0
  %271 = vmatprep.subr.mxu0 0.0
  %272 = vmatpush2.msra.mxu0 0.0
  %273 = vmatprep.subr.mxu0 0.0
  %274 = vmatpush2.msra.mxu0 0.0
  %275 = vmatprep.subr.mxu0 0.0
  %276 = vmatpush2.msra.mxu0 0.0
  %277 = vmatprep.subr.mxu0 0.0
  %278 = vmatpush2.msra.mxu0 0.0
  %279 = vmatprep.subr.mxu0 0.0
  %280 = vmatpush2.msra.mxu0 0.0
  %281 = vmatprep.subr.mxu0 0.0
  %282 = vmatpush2.msra.mxu0 0.0
  %283 = vmatprep.subr.mxu0 0.0
  %284 = vmatpush2.msra.mxu0 0.0
  %285 = vmatprep.subr.mxu0 0.0
  %286 = vmatpush2.msra.mxu0 0.0
  %287 = vmatprep.subr.mxu0 0.0
  %288 = vmatpush2.msra.mxu0 0.0
  %289 = vmatprep.subr.mxu0 0.0
  %290 = vmatpush2.msra.mxu0 0.0
  %291 = vmatprep.subr.mxu0 0.0
  %292 = vmatpush2.msra.mxu0 0.0
  %293 = vmatprep.mubr.f32.mxu0 0.0
  %294 = vmatmul.mubr.f32.gmra.mxu0 %v149
  %v295 = vpop.f32.mrf.mxu0
  %v296 = vadd.f32 0.0, %v295
  %v297 = vpop.f32.mrf.mxu0
  %298 = vmatprep.mubr.f32.mxu0 0.0
  %299 = vmatmul.mubr.f32.gmra.mxu0 %v150
  %v300 = vpop.f32.mrf.mxu0
  %v301 = vadd.f32 0.0, %v300
  %v302 = vpop.f32.mrf.mxu0
  %303 = vmatprep.mubr.f32.mxu0 0.0
  %304 = vmatmul.mubr.f32.gmra.mxu0 %v151
  %v305 = vpop.f32.mrf.mxu0
  %v306 = vadd.f32 0.0, %v305
  %v307 = vpop.f32.mrf.mxu0
  %308 = vmatprep.mubr.f32.mxu0 0.0
  %309 = vmatmul.mubr.f32.gmra.mxu0 %v152
  %v310 = vpop.f32.mrf.mxu0
  %v311 = vadd.f32 0.0, %v310
  %v312 = vpop.f32.mrf.mxu0
  %313 = vmatprep.mubr.f32.mxu0 0.0
  %314 = vmatmul.mubr.f32.gmra.mxu0 %v153
  %v315 = vpop.f32.mrf.mxu0
  %v316 = vadd.f32 0.0, %v315
  %v317 = vpop.f32.mrf.mxu0
  %318 = vmatprep.mubr.f32.mxu0 0.0
  %319 = vmatmul.mubr.f32.gmra.mxu0 %v154
  %v320 = vpop.f32.mrf.mxu0
  %v321 = vadd.f32 0.0, %v320
  %v322 = vpop.f32.mrf.mxu0
  %323 = vmatprep.mubr.f32.mxu0 0.0
  %324 = vmatmul.mubr.f32.gmra.mxu0 %v155
  %v325 = vpop.f32.mrf.mxu0
  %v326 = vadd.f32 0.0, %v325
  %v327 = vpop.f32.mrf.mxu0
  %328 = vmatprep.mubr.f32.mxu0 0.0
  %329 = vmatmul.mubr.f32.gmra.mxu0 %v156
  %v330 = vpop.f32.mrf.mxu0
  %v331 = vadd.f32 0.0, %v330
  %v332 = vpop.f32.mrf.mxu0
  %333 = vmatprep.mubr.f32.mxu0 0.0
  %334 = vmatmul.mubr.f32.gmra.mxu0 %v157
  %v335 = vpop.f32.mrf.mxu0
  %v336 = vadd.f32 0.0, %v335
  %v337 = vpop.f32.mrf.mxu0
  %338 = vmatprep.mubr.f32.mxu0 0.0
  %339 = vmatmul.mubr.f32.gmra.mxu0 %v158
  %v340 = vpop.f32.mrf.mxu0
  %v341 = vadd.f32 0.0, %v340
  %v342 = vpop.f32.mrf.mxu0
  %343 = vmatprep.mubr.f32.mxu0 0.0
  %344 = vmatmul.mubr.f32.gmra.mxu0 %v159
  %v345 = vpop.f32.mrf.mxu0
  %v346 = vadd.f32 0.0, %v345
  %v347 = vpop.f32.mrf.mxu0
  %348 = vmatprep.mubr.f32.mxu0 0.0
  %349 = vmatmul.mubr.f32.gmra.mxu0 %v160
  %v350 = vpop.f32.mrf.mxu0
  %v351 = vadd.f32 0.0, %v350
  %v352 = vpop.f32.mrf.mxu0
  %353 = vmatprep.mubr.f32.mxu0 0.0
  %354 = vmatmul.mubr.f32.gmra.mxu0 %v161
  %v355 = vpop.f32.mrf.mxu0
  %v356 = vadd.f32 0.0, %v355
  %v357 = vpop.f32.mrf.mxu0
  %358 = vmatprep.mubr.f32.mxu0 0.0
  %359 = vmatmul.mubr.f32.gmra.mxu0 %v162
  %v360 = vpop.f32.mrf.mxu0
  %v361 = vadd.f32 0.0, %v360
  %v362 = vpop.f32.mrf.mxu0
  %363 = vmatprep.mubr.f32.mxu0 0.0
  %364 = vmatmul.mubr.f32.gmra.mxu0 %v163
  %v365 = vpop.f32.mrf.mxu0
  %v366 = vadd.f32 0.0, %v365
  %v367 = vpop.f32.mrf.mxu0
  %368 = vmatprep.mubr.f32.mxu0 0.0
  %369 = vmatmul.mubr.f32.gmra.mxu0 %v164
  %v370 = vpop.f32.mrf.mxu0
  %v371 = vadd.f32 0.0, %v370
  %v372 = vpop.f32.mrf.mxu0
  %373 = vmatprep.mubr.f32.mxu0 0.0
  %374 = vmatmul.mubr.f32.gmra.mxu0 %v165
  %v375 = vpop.f32.mrf.mxu0
  %v376 = vadd.f32 0.0, %v375
  %v377 = vpop.f32.mrf.mxu0
  %378 = vmatprep.mubr.f32.mxu0 0.0
  %379 = vmatmul.mubr.f32.gmra.mxu0 %v166
  %v380 = vpop.f32.mrf.mxu0
  %v381 = vadd.f32 0.0, %v380
  %v382 = vpop.f32.mrf.mxu0
  %383 = vmatprep.mubr.f32.mxu0 0.0
  %384 = vmatmul.mubr.f32.gmra.mxu0 %v167
  %v385 = vpop.f32.mrf.mxu0
  %v386 = vadd.f32 0.0, %v385
  %v387 = vpop.f32.mrf.mxu0
  %388 = vmatprep.mubr.f32.mxu0 0.0
  %389 = vmatmul.mubr.f32.gmra.mxu0 %v168
  %v390 = vpop.f32.mrf.mxu0
  %v391 = vadd.f32 0.0, %v390
  %v392 = vpop.f32.mrf.mxu0
  %393 = vmatprep.mubr.f32.mxu0 0.0
  %394 = vmatmul.mubr.f32.gmra.mxu0 %v169
  %v395 = vpop.f32.mrf.mxu0
  %v396 = vadd.f32 0.0, %v395
  %v397 = vpop.f32.mrf.mxu0
  %398 = vmatprep.mubr.f32.mxu0 0.0
  %399 = vmatmul.mubr.f32.gmra.mxu0 %v170
  %v400 = vpop.f32.mrf.mxu0
  %v401 = vadd.f32 0.0, %v400
  %v402 = vpop.f32.mrf.mxu0
  %403 = vmatprep.mubr.f32.mxu0 0.0
  %404 = vmatmul.mubr.f32.gmra.mxu0 %v171
  %v405 = vpop.f32.mrf.mxu0
  %v406 = vadd.f32 0.0, %v405
  %v407 = vpop.f32.mrf.mxu0
  %408 = vmatprep.mubr.f32.mxu0 0.0
  %409 = vmatmul.mubr.f32.gmra.mxu0 %v172
  %v410 = vpop.f32.mrf.mxu0
  %v411 = vadd.f32 0.0, %v410
  %v412 = vpop.f32.mrf.mxu0
  %413 = vmatprep.mubr.f32.mxu0 0.0
  %414 = vmatmul.mubr.f32.gmra.mxu0 %v173
  %v415 = vpop.f32.mrf.mxu0
  %v416 = vadd.f32 0.0, %v415
  %v417 = vpop.f32.mrf.mxu0
  %418 = vmatprep.mubr.f32.mxu0 0.0
  %419 = vmatmul.mubr.f32.gmra.mxu0 %v174
  %v420 = vpop.f32.mrf.mxu0
  %v421 = vadd.f32 0.0, %v420
  %v422 = vpop.f32.mrf.mxu0
  %423 = vmatprep.mubr.f32.mxu0 0.0
  %424 = vmatmul.mubr.f32.gmra.mxu0 %v175
  %v425 = vpop.f32.mrf.mxu0
  %v426 = vadd.f32 0.0, %v425
  %v427 = vpop.f32.mrf.mxu0
  %428 = vmatprep.mubr.f32.mxu0 0.0
  %429 = vmatmul.mubr.f32.gmra.mxu0 %v176
  %v430 = vpop.f32.mrf.mxu0
  %v431 = vadd.f32 0.0, %v430
  %v432 = vpop.f32.mrf.mxu0
  %433 = vmatprep.mubr.f32.mxu0 0.0
  %434 = vmatmul.mubr.f32.gmra.mxu0 %v177
  %v435 = vpop.f32.mrf.mxu0
  %v436 = vadd.f32 0.0, %v435
  %v437 = vpop.f32.mrf.mxu0
  %438 = vmatprep.mubr.f32.mxu0 0.0
  %439 = vmatmul.mubr.f32.gmra.mxu0 %v178
  %v440 = vpop.f32.mrf.mxu0
  %v441 = vadd.f32 0.0, %v440
  %v442 = vpop.f32.mrf.mxu0
  %443 = vmatprep.mubr.f32.mxu0 0.0
  %444 = vmatmul.mubr.f32.gmra.mxu0 %v179
  %v445 = vpop.f32.mrf.mxu0
  %v446 = vadd.f32 0.0, %v445
  %v447 = vpop.f32.mrf.mxu0
  %448 = vmatprep.mubr.f32.mxu0 0.0
  %449 = vmatmul.mubr.f32.gmra.mxu0 %v180
  %v450 = vpop.f32.mrf.mxu0
  %v451 = vadd.f32 0.0, %v450
  %v452 = vpop.f32.mrf.mxu0
  %453 = vmatprep.mubr.f32.mxu0 0.0
  %454 = vmatmul.mubr.f32.gmra.mxu0 %v181
  %v455 = vpop.f32.mrf.mxu0
  %v456 = vadd.f32 0.0, %v455
  %v457 = vpop.f32.mrf.mxu0
  %458 = vmatprep.mubr.f32.mxu0 0.0
  %459 = vmatmul.mubr.f32.gmra.mxu0 %v182
  %v460 = vpop.f32.mrf.mxu0
  %v461 = vadd.f32 0.0, %v460
  %v462 = vpop.f32.mrf.mxu0
  %463 = vmatprep.mubr.f32.mxu0 0.0
  %464 = vmatmul.mubr.f32.gmra.mxu0 %v183
  %v465 = vpop.f32.mrf.mxu0
  %v466 = vadd.f32 0.0, %v465
  %v467 = vpop.f32.mrf.mxu0
  %468 = vmatprep.mubr.f32.mxu0 0.0
  %469 = vmatmul.mubr.f32.gmra.mxu0 %v184
  %v470 = vpop.f32.mrf.mxu0
  %v471 = vadd.f32 0.0, %v470
  %v472 = vpop.f32.mrf.mxu0
  %473 = vmatprep.mubr.f32.mxu0 0.0
  %474 = vmatmul.mubr.f32.gmra.mxu0 %v185
  %v475 = vpop.f32.mrf.mxu0
  %v476 = vadd.f32 0.0, %v475
  %v477 = vpop.f32.mrf.mxu0
  %478 = vmatprep.mubr.f32.mxu0 0.0
  %479 = vmatmul.mubr.f32.gmra.mxu0 %v186
  %v480 = vpop.f32.mrf.mxu0
  %v481 = vadd.f32 0.0, %v480
  %v482 = vpop.f32.mrf.mxu0
  %483 = vmatprep.mubr.f32.mxu0 0.0
  %484 = vmatmul.mubr.f32.gmra.mxu0 %v187
  %v485 = vpop.f32.mrf.mxu0
  %v486 = vadd.f32 0.0, %v485
  %v487 = vpop.f32.mrf.mxu0
  %488 = vmatprep.mubr.f32.mxu0 0.0
  %489 = vmatmul.mubr.f32.gmra.mxu0 %v188
  %v490 = vpop.f32.mrf.mxu0
  %v491 = vadd.f32 0.0, %v490
  %v492 = vpop.f32.mrf.mxu0
  %493 = vmatprep.mubr.f32.mxu0 0.0
  %494 = vmatmul.mubr.f32.gmra.mxu0 %v189
  %v495 = vpop.f32.mrf.mxu0
  %v496 = vadd.f32 0.0, %v495
  %v497 = vpop.f32.mrf.mxu0
  %498 = vmatprep.mubr.f32.mxu0 0.0
  %499 = vmatmul.mubr.f32.gmra.mxu0 %v190
  %v500 = vpop.f32.mrf.mxu0
  %v501 = vadd.f32 0.0, %v500
  %v502 = vpop.f32.mrf.mxu0
  %503 = vmatprep.mubr.f32.mxu0 0.0
  %504 = vmatmul.mubr.f32.gmra.mxu0 %v191
  %v505 = vpop.f32.mrf.mxu0
  %v506 = vadd.f32 0.0, %v505
  %v507 = vpop.f32.mrf.mxu0
  %508 = vmatprep.mubr.f32.mxu0 0.0
  %509 = vmatmul.mubr.f32.gmra.mxu0 %v192
  %v510 = vpop.f32.mrf.mxu0
  %v511 = vadd.f32 0.0, %v510
  %v512 = vpop.f32.mrf.mxu0
  %513 = vmatprep.mubr.f32.mxu0 0.0
  %514 = vmatmul.mubr.f32.gmra.mxu0 %v193
  %v515 = vpop.f32.mrf.mxu0
  %v516 = vadd.f32 0.0, %v515
  %v517 = vpop.f32.mrf.mxu0
  %518 = vmatprep.mubr.f32.mxu0 0.0
  %519 = vmatmul.mubr.f32.gmra.mxu0 %v194
  %v520 = vpop.f32.mrf.mxu0
  %v521 = vadd.f32 0.0, %v520
  %v522 = vpop.f32.mrf.mxu0
  %523 = vmatprep.mubr.f32.mxu0 0.0
  %524 = vmatmul.mubr.f32.gmra.mxu0 %v195
  %v525 = vpop.f32.mrf.mxu0
  %v526 = vadd.f32 0.0, %v525
  %v527 = vpop.f32.mrf.mxu0
  %528 = vmatprep.mubr.f32.mxu0 0.0
  %529 = vmatmul.mubr.f32.gmra.mxu0 %v196
  %v530 = vpop.f32.mrf.mxu0
  %v531 = vadd.f32 0.0, %v530
  %v532 = vpop.f32.mrf.mxu0
  %533 = vmatprep.mubr.f32.mxu0 0.0
  %534 = vmatmul.mubr.f32.gmra.mxu0 %v197
  %v535 = vpop.f32.mrf.mxu0
  %v536 = vadd.f32 0.0, %v535
  %v537 = vpop.f32.mrf.mxu0
  %538 = vmatprep.mubr.f32.mxu0 0.0
  %539 = vmatmul.mubr.f32.gmra.mxu0 %v198
  %v540 = vpop.f32.mrf.mxu0
  %v541 = vadd.f32 0.0, %v540
  %v542 = vpop.f32.mrf.mxu0
  %543 = vmatprep.mubr.f32.mxu0 0.0
  %544 = vmatmul.mubr.f32.gmra.mxu0 %v199
  %v545 = vpop.f32.mrf.mxu0
  %v546 = vadd.f32 0.0, %v545
  %v547 = vpop.f32.mrf.mxu0
  %548 = vmatprep.mubr.f32.mxu0 0.0
  %549 = vmatmul.mubr.f32.gmra.mxu0 %v200
  %v550 = vpop.f32.mrf.mxu0
  %v551 = vadd.f32 0.0, %v550
  %v552 = vpop.f32.mrf.mxu0
  %553 = vmatprep.mubr.f32.mxu0 0.0
  %554 = vmatmul.mubr.f32.gmra.mxu0 %v201
  %v555 = vpop.f32.mrf.mxu0
  %v556 = vadd.f32 0.0, %v555
  %v557 = vpop.f32.mrf.mxu0
  %558 = vmatprep.mubr.f32.mxu0 0.0
  %559 = vmatmul.mubr.f32.gmra.mxu0 %v202
  %v560 = vpop.f32.mrf.mxu0
  %v561 = vadd.f32 0.0, %v560
  %v562 = vpop.f32.mrf.mxu0
  %563 = vmatprep.mubr.f32.mxu0 0.0
  %564 = vmatmul.mubr.f32.gmra.mxu0 %v203
  %v565 = vpop.f32.mrf.mxu0
  %v566 = vadd.f32 0.0, %v565
  %v567 = vpop.f32.mrf.mxu0
  %568 = vmatprep.mubr.f32.mxu0 0.0
  %569 = vmatmul.mubr.f32.gmra.mxu0 %v204
  %v570 = vpop.f32.mrf.mxu0
  %v571 = vadd.f32 0.0, %v570
  %v572 = vpop.f32.mrf.mxu0
  %573 = vmatprep.mubr.f32.mxu0 0.0
  %574 = vmatmul.mubr.f32.gmra.mxu0 %v205
  %v575 = vpop.f32.mrf.mxu0
  %v576 = vadd.f32 0.0, %v575
  %v577 = vpop.f32.mrf.mxu0
  %578 = vmatprep.mubr.f32.mxu0 0.0
  %579 = vmatmul.mubr.f32.gmra.mxu0 %v206
  %v580 = vpop.f32.mrf.mxu0
  %v581 = vadd.f32 0.0, %v580
  %v582 = vpop.f32.mrf.mxu0
  %583 = vmatprep.mubr.f32.mxu0 0.0
  %584 = vmatmul.mubr.f32.gmra.mxu0 %v207
  %v585 = vpop.f32.mrf.mxu0
  %v586 = vadd.f32 0.0, %v585
  %v587 = vpop.f32.mrf.mxu0
  %588 = vmatprep.mubr.f32.mxu0 0.0
  %589 = vmatmul.mubr.f32.gmra.mxu0 %v208
  %v590 = vpop.f32.mrf.mxu0
  %v591 = vadd.f32 0.0, %v590
  %v592 = vpop.f32.mrf.mxu0
  %593 = vmatprep.mubr.f32.mxu0 0.0
  %594 = vmatmul.mubr.f32.gmra.mxu0 %v209
  %v595 = vpop.f32.mrf.mxu0
  %v596 = vadd.f32 0.0, %v595
  %v597 = vpop.f32.mrf.mxu0
  %598 = vmatprep.mubr.f32.mxu0 0.0
  %599 = vmatmul.mubr.f32.gmra.mxu0 %v210
  %v600 = vpop.f32.mrf.mxu0
  %v601 = vadd.f32 0.0, %v600
  %v602 = vpop.f32.mrf.mxu0
  %603 = vmatprep.mubr.f32.mxu0 0.0
  %604 = vmatmul.mubr.f32.gmra.mxu0 %v211
  %v605 = vpop.f32.mrf.mxu0
  %v606 = vadd.f32 0.0, %v605
  %v607 = vpop.f32.mrf.mxu0
  %608 = vmatprep.mubr.f32.mxu0 0.0
  %609 = vmatmul.mubr.f32.gmra.mxu0 %v212
  %v610 = vpop.f32.mrf.mxu0
  %v611 = vadd.f32 0.0, %v610
  %v612 = vpop.f32.mrf.mxu0
  %613 = vdwg.mxu0
  %v614 = vadd.f32 %v85, %v296
  %v615 = vadd.f32 %v86, %v301
  %v616 = vadd.f32 %v87, %v306
  %v617 = vadd.f32 %v88, %v311
  %v618 = vadd.f32 %v89, %v316
  %v619 = vadd.f32 %v90, %v321
  %v620 = vadd.f32 %v91, %v326
  %v621 = vadd.f32 %v92, %v331
  %v622 = vadd.f32 %v93, %v336
  %v623 = vadd.f32 %v94, %v341
  %v624 = vadd.f32 %v95, %v346
  %v625 = vadd.f32 %v96, %v351
  %v626 = vadd.f32 %v97, %v356
  %v627 = vadd.f32 %v98, %v361
  %v628 = vadd.f32 %v99, %v366
  %v629 = vadd.f32 %v100, %v371
  %v630 = vadd.f32 %v101, %v376
  %v631 = vadd.f32 %v102, %v381
  %v632 = vadd.f32 %v103, %v386
  %v633 = vadd.f32 %v104, %v391
  %v634 = vadd.f32 %v105, %v396
  %v635 = vadd.f32 %v106, %v401
  %v636 = vadd.f32 %v107, %v406
  %v637 = vadd.f32 %v108, %v411
  %v638 = vadd.f32 %v109, %v416
  %v639 = vadd.f32 %v110, %v421
  %v640 = vadd.f32 %v111, %v426
  %v641 = vadd.f32 %v112, %v431
  %v642 = vadd.f32 %v113, %v436
  %v643 = vadd.f32 %v114, %v441
  %v644 = vadd.f32 %v115, %v446
  %v645 = vadd.f32 %v116, %v451
  %v646 = vadd.f32 %v117, %v456
  %v647 = vadd.f32 %v118, %v461
  %v648 = vadd.f32 %v119, %v466
  %v649 = vadd.f32 %v120, %v471
  %v650 = vadd.f32 %v121, %v476
  %v651 = vadd.f32 %v122, %v481
  %v652 = vadd.f32 %v123, %v486
  %v653 = vadd.f32 %v124, %v491
  %v654 = vadd.f32 %v125, %v496
  %v655 = vadd.f32 %v126, %v501
  %v656 = vadd.f32 %v127, %v506
  %v657 = vadd.f32 %v128, %v511
  %v658 = vadd.f32 %v129, %v516
  %v659 = vadd.f32 %v130, %v521
  %v660 = vadd.f32 %v131, %v526
  %v661 = vadd.f32 %v132, %v531
  %v662 = vadd.f32 %v133, %v536
  %v663 = vadd.f32 %v134, %v541
  %v664 = vadd.f32 %v135, %v546
  %v665 = vadd.f32 %v136, %v551
  %v666 = vadd.f32 %v137, %v556
  %v667 = vadd.f32 %v138, %v561
  %v668 = vadd.f32 %v139, %v566
  %v669 = vadd.f32 %v140, %v571
  %v670 = vadd.f32 %v141, %v576
  %v671 = vadd.f32 %v142, %v581
  %v672 = vadd.f32 %v143, %v586
  %v673 = vadd.f32 %v144, %v591
  %v674 = vadd.f32 %v145, %v596
  %v675 = vadd.f32 %v146, %v601
  %v676 = vadd.f32 %v147, %v606
  %v677 = vadd.f32 %v148, %v611
  %678 = vst [vmem:[#allocation2] sm:$0xff] %v614
  %679 = vst [vmem:[#allocation2 + $0x8] sm:$0xff] %v615
  %680 = vst [vmem:[#allocation2 + $0x10] sm:$0xff] %v616
  %681 = vst [vmem:[#allocation2 + $0x18] sm:$0xff] %v617
  %682 = vst [vmem:[#allocation2 + $0x20] sm:$0xff] %v618
  %683 = vst [vmem:[#allocation2 + $0x28] sm:$0xff] %v619
  %684 = vst [vmem:[#allocation2 + $0x30] sm:$0xff] %v620
  %685 = vst [vmem:[#allocation2 + $0x38] sm:$0xff] %v621
  %686 = vst [vmem:[#allocation2 + $0x40] sm:$0xff] %v622
  %687 = vst [vmem:[#allocation2 + $0x48] sm:$0xff] %v623
  %688 = vst [vmem:[#allocation2 + $0x50] sm:$0xff] %v624
  %689 = vst [vmem:[#allocation2 + $0x58] sm:$0xff] %v625
  %690 = vst [vmem:[#allocation2 + $0x60] sm:$0xff] %v626
  %691 = vst [vmem:[#allocation2 + $0x68] sm:$0xff] %v627
  %692 = vst [vmem:[#allocation2 + $0x70] sm:$0xff] %v628
  %693 = vst [vmem:[#allocation2 + $0x78] sm:$0xff] %v629
  %694 = vst [vmem:[#allocation2 + $0x80] sm:$0xff] %v630
  %695 = vst [vmem:[#allocation2 + $0x88] sm:$0xff] %v631
  %696 = vst [vmem:[#allocation2 + $0x90] sm:$0xff] %v632
  %697 = vst [vmem:[#allocation2 + $0x98] sm:$0xff] %v633
  %698 = vst [vmem:[#allocation2 + $0xa0] sm:$0xff] %v634
  %699 = vst [vmem:[#allocation2 + $0xa8] sm:$0xff] %v635
  %700 = vst [vmem:[#allocation2 + $0xb0] sm:$0xff] %v636
  %701 = vst [vmem:[#allocation2 + $0xb8] sm:$0xff] %v637
  %702 = vst [vmem:[#allocation2 + $0xc0] sm:$0xff] %v638
  %703 = vst [vmem:[#allocation2 + $0xc8] sm:$0xff] %v639
  %704 = vst [vmem:[#allocation2 + $0xd0] sm:$0xff] %v640
  %705 = vst [vmem:[#allocation2 + $0xd8] sm:$0xff] %v641
  %706 = vst [vmem:[#allocation2 + $0xe0] sm:$0xff] %v642
  %707 = vst [vmem:[#allocation2 + $0xe8] sm:$0xff] %v643
  %708 = vst [vmem:[#allocation2 + $0xf0] sm:$0xff] %v644
  %709 = vst [vmem:[#allocation2 + $0xf8] sm:$0xff] %v645
  %710 = vst [vmem:[#allocation2 + $0x100] sm:$0xff] %v646
  %711 = vst [vmem:[#allocation2 + $0x108] sm:$0xff] %v647
  %712 = vst [vmem:[#allocation2 + $0x110] sm:$0xff] %v648
  %713 = vst [vmem:[#allocation2 + $0x118] sm:$0xff] %v649
  %714 = vst [vmem:[#allocation2 + $0x120] sm:$0xff] %v650
  %715 = vst [vmem:[#allocation2 + $0x128] sm:$0xff] %v651
  %716 = vst [vmem:[#allocation2 + $0x130] sm:$0xff] %v652
  %717 = vst [vmem:[#allocation2 + $0x138] sm:$0xff] %v653
  %718 = vst [vmem:[#allocation2 + $0x140] sm:$0xff] %v654
  %719 = vst [vmem:[#allocation2 + $0x148] sm:$0xff] %v655
  %720 = vst [vmem:[#allocation2 + $0x150] sm:$0xff] %v656
  %721 = vst [vmem:[#allocation2 + $0x158] sm:$0xff] %v657
  %722 = vst [vmem:[#allocation2 + $0x160] sm:$0xff] %v658
  %723 = vst [vmem:[#allocation2 + $0x168] sm:$0xff] %v659
  %724 = vst [vmem:[#allocation2 + $0x170] sm:$0xff] %v660
  %725 = vst [vmem:[#allocation2 + $0x178] sm:$0xff] %v661
  %726 = vst [vmem:[#allocation2 + $0x180] sm:$0xff] %v662
  %727 = vst [vmem:[#allocation2 + $0x188] sm:$0xff] %v663
  %728 = vst [vmem:[#allocation2 + $0x190] sm:$0xff] %v664
  %729 = vst [vmem:[#allocation2 + $0x198] sm:$0xff] %v665
  %730 = vst [vmem:[#allocation2 + $0x1a0] sm:$0xff] %v666
  %731 = vst [vmem:[#allocation2 + $0x1a8] sm:$0xff] %v667
  %732 = vst [vmem:[#allocation2 + $0x1b0] sm:$0xff] %v668
  %733 = vst [vmem:[#allocation2 + $0x1b8] sm:$0xff] %v669
  %734 = vst [vmem:[#allocation2 + $0x1c0] sm:$0xff] %v670
  %735 = vst [vmem:[#allocation2 + $0x1c8] sm:$0xff] %v671
  %736 = vst [vmem:[#allocation2 + $0x1d0] sm:$0xff] %v672
  %737 = vst [vmem:[#allocation2 + $0x1d8] sm:$0xff] %v673
  %738 = vst [vmem:[#allocation2 + $0x1e0] sm:$0xff] %v674
  %739 = vst [vmem:[#allocation2 + $0x1e8] sm:$0xff] %v675
  %740 = vst [vmem:[#allocation2 + $0x1f0] sm:$0xff] %v676
  %741 = vst [vmem:[#allocation2 + $0x1f8] sm:$0xff] %v677
  // Predicated region
  $region22: #{conv_decoder_forward.5} parent=0 // pred_check
    %p742 = pneg %p17
  $region23: #{conv_decoder_forward.5} parent=0 // pred_check_branch
    %744 = sbr.rel (%p742) target = $region25
  $region24: #{conv_decoder_forward.5} parent=0 // pred_region
    %v745 = vld [vmem:[#allocation2] sm:$0xff]
    %v746 = vld [vmem:[#allocation2 + $0x8] sm:$0xff]
    %v747 = vld [vmem:[#allocation2 + $0x10] sm:$0xff]
    %v748 = vld [vmem:[#allocation2 + $0x18] sm:$0xff]
    %v749 = vld [vmem:[#allocation2 + $0x20] sm:$0xff]
    %v750 = vld [vmem:[#allocation2 + $0x28] sm:$0xff]
    %v751 = vld [vmem:[#allocation2 + $0x30] sm:$0xff]
    %v752 = vld [vmem:[#allocation2 + $0x38] sm:$0xff]
    %v753 = vld [vmem:[#allocation2 + $0x40] sm:$0xff]
    %v754 = vld [vmem:[#allocation2 + $0x48] sm:$0xff]
    %v755 = vld [vmem:[#allocation2 + $0x50] sm:$0xff]
    %v756 = vld [vmem:[#allocation2 + $0x58] sm:$0xff]
    %v757 = vld [vmem:[#allocation2 + $0x60] sm:$0xff]
    %v758 = vld [vmem:[#allocation2 + $0x68] sm:$0xff]
    %v759 = vld [vmem:[#allocation2 + $0x70] sm:$0xff]
    %v760 = vld [vmem:[#allocation2 + $0x78] sm:$0xff]
    %v761 = vld [vmem:[#allocation2 + $0x80] sm:$0xff]
    %v762 = vld [vmem:[#allocation2 + $0x88] sm:$0xff]
    %v763 = vld [vmem:[#allocation2 + $0x90] sm:$0xff]
    %v764 = vld [vmem:[#allocation2 + $0x98] sm:$0xff]
    %v765 = vld [vmem:[#allocation2 + $0xa0] sm:$0xff]
    %v766 = vld [vmem:[#allocation2 + $0xa8] sm:$0xff]
    %v767 = vld [vmem:[#allocation2 + $0xb0] sm:$0xff]
    %v768 = vld [vmem:[#allocation2 + $0xb8] sm:$0xff]
    %v769 = vld [vmem:[#allocation2 + $0xc0] sm:$0xff]
    %v770 = vld [vmem:[#allocation2 + $0xc8] sm:$0xff]
    %v771 = vld [vmem:[#allocation2 + $0xd0] sm:$0xff]
    %v772 = vld [vmem:[#allocation2 + $0xd8] sm:$0xff]
    %v773 = vld [vmem:[#allocation2 + $0xe0] sm:$0xff]
    %v774 = vld [vmem:[#allocation2 + $0xe8] sm:$0xff]
    %v775 = vld [vmem:[#allocation2 + $0xf0] sm:$0xff]
    %v776 = vld [vmem:[#allocation2 + $0xf8] sm:$0xff]
    %v777 = vld [vmem:[#allocation2 + $0x100] sm:$0xff]
    %v778 = vld [vmem:[#allocation2 + $0x108] sm:$0xff]
    %v779 = vld [vmem:[#allocation2 + $0x110] sm:$0xff]
    %v780 = vld [vmem:[#allocation2 + $0x118] sm:$0xff]
    %v781 = vld [vmem:[#allocation2 + $0x120] sm:$0xff]
    %v782 = vld [vmem:[#allocation2 + $0x128] sm:$0xff]
    %v783 = vld [vmem:[#allocation2 + $0x130] sm:$0xff]
    %v784 = vld [vmem:[#allocation2 + $0x138] sm:$0xff]
    %v785 = vld [vmem:[#allocation2 + $0x140] sm:$0xff]
    %v786 = vld [vmem:[#allocation2 + $0x148] sm:$0xff]
    %v787 = vld [vmem:[#allocation2 + $0x150] sm:$0xff]
    %v788 = vld [vmem:[#allocation2 + $0x158] sm:$0xff]
    %v789 = vld [vmem:[#allocation2 + $0x160] sm:$0xff]
    %v790 = vld [vmem:[#allocation2 + $0x168] sm:$0xff]
    %v791 = vld [vmem:[#allocation2 + $0x170] sm:$0xff]
    %v792 = vld [vmem:[#allocation2 + $0x178] sm:$0xff]
    %v793 = vld [vmem:[#allocation2 + $0x180] sm:$0xff]
    %v794 = vld [vmem:[#allocation2 + $0x188] sm:$0xff]
    %v795 = vld [vmem:[#allocation2 + $0x190] sm:$0xff]
    %v796 = vld [vmem:[#allocation2 + $0x198] sm:$0xff]
    %v797 = vld [vmem:[#allocation2 + $0x1a0] sm:$0xff]
    %v798 = vld [vmem:[#allocation2 + $0x1a8] sm:$0xff]
    %v799 = vld [vmem:[#allocation2 + $0x1b0] sm:$0xff]
    %v800 = vld [vmem:[#allocation2 + $0x1b8] sm:$0xff]
    %v801 = vld [vmem:[#allocation2 + $0x1c0] sm:$0xff]
    %v802 = vld [vmem:[#allocation2 + $0x1c8] sm:$0xff]
    %v803 = vld [vmem:[#allocation2 + $0x1d0] sm:$0xff]
    %v804 = vld [vmem:[#allocation2 + $0x1d8] sm:$0xff]
    %v805 = vld [vmem:[#allocation2 + $0x1e0] sm:$0xff]
    %v806 = vld [vmem:[#allocation2 + $0x1e8] sm:$0xff]
    %v807 = vld [vmem:[#allocation2 + $0x1f0] sm:$0xff]
    %v808 = vld [vmem:[#allocation2 + $0x1f8] sm:$0xff]
    %v809 = vld [vmem:[%s2] sm:$0x1]
    %v811 = vlaneseq
    %v812 = vshrl.u32 %v811, 7
    %v813 = vsub.s32 0, %v812
    %v814 = vrot.slane %v809, %v813
    %v816 = vmul.f32 %v745, %v814
    %v817 = vmul.f32 %v746, %v814
    %v818 = vmul.f32 %v747, %v814
    %v819 = vmul.f32 %v748, %v814
    %v820 = vmul.f32 %v749, %v814
    %v821 = vmul.f32 %v750, %v814
    %v822 = vmul.f32 %v751, %v814
    %v823 = vmul.f32 %v752, %v814
    %v824 = vmul.f32 %v753, %v814
    %v825 = vmul.f32 %v754, %v814
    %v826 = vmul.f32 %v755, %v814
    %v827 = vmul.f32 %v756, %v814
    %v828 = vmul.f32 %v757, %v814
    %v829 = vmul.f32 %v758, %v814
    %v830 = vmul.f32 %v759, %v814
    %v831 = vmul.f32 %v760, %v814
    %v832 = vmul.f32 %v761, %v814
    %v833 = vmul.f32 %v762, %v814
    %v834 = vmul.f32 %v763, %v814
    %v835 = vmul.f32 %v764, %v814
    %v836 = vmul.f32 %v765, %v814
    %v837 = vmul.f32 %v766, %v814
    %v838 = vmul.f32 %v767, %v814
    %v839 = vmul.f32 %v768, %v814
    %v840 = vmul.f32 %v769, %v814
    %v841 = vmul.f32 %v770, %v814
    %v842 = vmul.f32 %v771, %v814
    %v843 = vmul.f32 %v772, %v814
    %v844 = vmul.f32 %v773, %v814
    %v845 = vmul.f32 %v774, %v814
    %v846 = vmul.f32 %v775, %v814
    %v847 = vmul.f32 %v776, %v814
    %v848 = vmul.f32 %v777, %v814
    %v849 = vmul.f32 %v778, %v814
    %v850 = vmul.f32 %v779, %v814
    %v851 = vmul.f32 %v780, %v814
    %v852 = vmul.f32 %v781, %v814
    %v853 = vmul.f32 %v782, %v814
    %v854 = vmul.f32 %v783, %v814
    %v855 = vmul.f32 %v784, %v814
    %v856 = vmul.f32 %v785, %v814
    %v857 = vmul.f32 %v786, %v814
    %v858 = vmul.f32 %v787, %v814
    %v859 = vmul.f32 %v788, %v814
    %v860 = vmul.f32 %v789, %v814
    %v861 = vmul.f32 %v790, %v814
    %v862 = vmul.f32 %v791, %v814
    %v863 = vmul.f32 %v792, %v814
    %v864 = vmul.f32 %v793, %v814
    %v865 = vmul.f32 %v794, %v814
    %v866 = vmul.f32 %v795, %v814
    %v867 = vmul.f32 %v796, %v814
    %v868 = vmul.f32 %v797, %v814
    %v869 = vmul.f32 %v798, %v814
    %v870 = vmul.f32 %v799, %v814
    %v871 = vmul.f32 %v800, %v814
    %v872 = vmul.f32 %v801, %v814
    %v873 = vmul.f32 %v802, %v814
    %v874 = vmul.f32 %v803, %v814
    %v875 = vmul.f32 %v804, %v814
    %v876 = vmul.f32 %v805, %v814
    %v877 = vmul.f32 %v806, %v814
    %v878 = vmul.f32 %v807, %v814
    %v879 = vmul.f32 %v808, %v814
    %v880 = vld [vmem:[%s3] sm:$0x1]
    %v882 = vlaneseq
    %v883 = vshrl.u32 %v882, 7
    %v884 = vsub.s32 0, %v883
    %v885 = vrot.slane %v880, %v884
    %v887 = vadd.f32 %v816, %v885
    %v888 = vadd.f32 %v817, %v885
    %v889 = vadd.f32 %v818, %v885
    %v890 = vadd.f32 %v819, %v885
    %v891 = vadd.f32 %v820, %v885
    %v892 = vadd.f32 %v821, %v885
    %v893 = vadd.f32 %v822, %v885
    %v894 = vadd.f32 %v823, %v885
    %v895 = vadd.f32 %v824, %v885
    %v896 = vadd.f32 %v825, %v885
    %v897 = vadd.f32 %v826, %v885
    %v898 = vadd.f32 %v827, %v885
    %v899 = vadd.f32 %v828, %v885
    %v900 = vadd.f32 %v829, %v885
    %v901 = vadd.f32 %v830, %v885
    %v902 = vadd.f32 %v831, %v885
    %v903 = vadd.f32 %v832, %v885
    %v904 = vadd.f32 %v833, %v885
    %v905 = vadd.f32 %v834, %v885
    %v906 = vadd.f32 %v835, %v885
    %v907 = vadd.f32 %v836, %v885
    %v908 = vadd.f32 %v837, %v885
    %v909 = vadd.f32 %v838, %v885
    %v910 = vadd.f32 %v839, %v885
    %v911 = vadd.f32 %v840, %v885
    %v912 = vadd.f32 %v841, %v885
    %v913 = vadd.f32 %v842, %v885
    %v914 = vadd.f32 %v843, %v885
    %v915 = vadd.f32 %v844, %v885
    %v916 = vadd.f32 %v845, %v885
    %v917 = vadd.f32 %v846, %v885
    %v918 = vadd.f32 %v847, %v885
    %v919 = vadd.f32 %v848, %v885
    %v920 = vadd.f32 %v849, %v885
    %v921 = vadd.f32 %v850, %v885
    %v922 = vadd.f32 %v851, %v885
    %v923 = vadd.f32 %v852, %v885
    %v924 = vadd.f32 %v853, %v885
    %v925 = vadd.f32 %v854, %v885
    %v926 = vadd.f32 %v855, %v885
    %v927 = vadd.f32 %v856, %v885
    %v928 = vadd.f32 %v857, %v885
    %v929 = vadd.f32 %v858, %v885
    %v930 = vadd.f32 %v859, %v885
    %v931 = vadd.f32 %v860, %v885
    %v932 = vadd.f32 %v861, %v885
    %v933 = vadd.f32 %v862, %v885
    %v934 = vadd.f32 %v863, %v885
    %v935 = vadd.f32 %v864, %v885
    %v936 = vadd.f32 %v865, %v885
    %v937 = vadd.f32 %v866, %v885
    %v938 = vadd.f32 %v867, %v885
    %v939 = vadd.f32 %v868, %v885
    %v940 = vadd.f32 %v869, %v885
    %v941 = vadd.f32 %v870, %v885
    %v942 = vadd.f32 %v871, %v885
    %v943 = vadd.f32 %v872, %v885
    %v944 = vadd.f32 %v873, %v885
    %v945 = vadd.f32 %v874, %v885
    %v946 = vadd.f32 %v875, %v885
    %v947 = vadd.f32 %v876, %v885
    %v948 = vadd.f32 %v877, %v885
    %v949 = vadd.f32 %v878, %v885
    %v950 = vadd.f32 %v879, %v885
    %v951 = vtanh.pop %v887
    %v952 = vtanh.pop %v888
    %v953 = vtanh.pop %v889
    %v954 = vtanh.pop %v890
    %v955 = vtanh.pop %v891
    %v956 = vtanh.pop %v892
    %v957 = vtanh.pop %v893
    %v958 = vtanh.pop %v894
    %v959 = vtanh.pop %v895
    %v960 = vtanh.pop %v896
    %v961 = vtanh.pop %v897
    %v962 = vtanh.pop %v898
    %v963 = vtanh.pop %v899
    %v964 = vtanh.pop %v900
    %v965 = vtanh.pop %v901
    %v966 = vtanh.pop %v902
    %v967 = vtanh.pop %v903
    %v968 = vtanh.pop %v904
    %v969 = vtanh.pop %v905
    %v970 = vtanh.pop %v906
    %v971 = vtanh.pop %v907
    %v972 = vtanh.pop %v908
    %v973 = vtanh.pop %v909
    %v974 = vtanh.pop %v910
    %v975 = vtanh.pop %v911
    %v976 = vtanh.pop %v912
    %v977 = vtanh.pop %v913
    %v978 = vtanh.pop %v914
    %v979 = vtanh.pop %v915
    %v980 = vtanh.pop %v916
    %v981 = vtanh.pop %v917
    %v982 = vtanh.pop %v918
    %v983 = vtanh.pop %v919
    %v984 = vtanh.pop %v920
    %v985 = vtanh.pop %v921
    %v986 = vtanh.pop %v922
    %v987 = vtanh.pop %v923
    %v988 = vtanh.pop %v924
    %v989 = vtanh.pop %v925
    %v990 = vtanh.pop %v926
    %v991 = vtanh.pop %v927
    %v992 = vtanh.pop %v928
    %v993 = vtanh.pop %v929
    %v994 = vtanh.pop %v930
    %v995 = vtanh.pop %v931
    %v996 = vtanh.pop %v932
    %v997 = vtanh.pop %v933
    %v998 = vtanh.pop %v934
    %v999 = vtanh.pop %v935
    %v1000 = vtanh.pop %v936
    %v1001 = vtanh.pop %v937
    %v1002 = vtanh.pop %v938
    %v1003 = vtanh.pop %v939
    %v1004 = vtanh.pop %v940
    %v1005 = vtanh.pop %v941
    %v1006 = vtanh.pop %v942
    %v1007 = vtanh.pop %v943
    %v1008 = vtanh.pop %v944
    %v1009 = vtanh.pop %v945
    %v1010 = vtanh.pop %v946
    %v1011 = vtanh.pop %v947
    %v1012 = vtanh.pop %v948
    %v1013 = vtanh.pop %v949
    %v1014 = vtanh.pop %v950
    %1015 = vst [vmem:[%s4] sm:$0xff] %v951
    %1016 = vst [vmem:[%s4 + $0x8] sm:$0xff] %v952
    %1017 = vst [vmem:[%s4 + $0x10] sm:$0xff] %v953
    %1018 = vst [vmem:[%s4 + $0x18] sm:$0xff] %v954
    %1019 = vst [vmem:[%s4 + $0x20] sm:$0xff] %v955
    %1020 = vst [vmem:[%s4 + $0x28] sm:$0xff] %v956
    %1021 = vst [vmem:[%s4 + $0x30] sm:$0xff] %v957
    %1022 = vst [vmem:[%s4 + $0x38] sm:$0xff] %v958
    %1023 = vst [vmem:[%s4 + $0x40] sm:$0xff] %v959
    %1024 = vst [vmem:[%s4 + $0x48] sm:$0xff] %v960
    %1025 = vst [vmem:[%s4 + $0x50] sm:$0xff] %v961
    %1026 = vst [vmem:[%s4 + $0x58] sm:$0xff] %v962
    %1027 = vst [vmem:[%s4 + $0x60] sm:$0xff] %v963
    %1028 = vst [vmem:[%s4 + $0x68] sm:$0xff] %v964
    %1029 = vst [vmem:[%s4 + $0x70] sm:$0xff] %v965
    %1030 = vst [vmem:[%s4 + $0x78] sm:$0xff] %v966
    %1031 = vst [vmem:[%s4 + $0x80] sm:$0xff] %v967
    %1032 = vst [vmem:[%s4 + $0x88] sm:$0xff] %v968
    %1033 = vst [vmem:[%s4 + $0x90] sm:$0xff] %v969
    %1034 = vst [vmem:[%s4 + $0x98] sm:$0xff] %v970
    %1035 = vst [vmem:[%s4 + $0xa0] sm:$0xff] %v971
    %1036 = vst [vmem:[%s4 + $0xa8] sm:$0xff] %v972
    %1037 = vst [vmem:[%s4 + $0xb0] sm:$0xff] %v973
    %1038 = vst [vmem:[%s4 + $0xb8] sm:$0xff] %v974
    %1039 = vst [vmem:[%s4 + $0xc0] sm:$0xff] %v975
    %1040 = vst [vmem:[%s4 + $0xc8] sm:$0xff] %v976
    %1041 = vst [vmem:[%s4 + $0xd0] sm:$0xff] %v977
    %1042 = vst [vmem:[%s4 + $0xd8] sm:$0xff] %v978
    %1043 = vst [vmem:[%s4 + $0xe0] sm:$0xff] %v979
    %1044 = vst [vmem:[%s4 + $0xe8] sm:$0xff] %v980
    %1045 = vst [vmem:[%s4 + $0xf0] sm:$0xff] %v981
    %1046 = vst [vmem:[%s4 + $0xf8] sm:$0xff] %v982
    %1047 = vst [vmem:[%s4 + $0x100] sm:$0xff] %v983
    %1048 = vst [vmem:[%s4 + $0x108] sm:$0xff] %v984
    %1049 = vst [vmem:[%s4 + $0x110] sm:$0xff] %v985
    %1050 = vst [vmem:[%s4 + $0x118] sm:$0xff] %v986
    %1051 = vst [vmem:[%s4 + $0x120] sm:$0xff] %v987
    %1052 = vst [vmem:[%s4 + $0x128] sm:$0xff] %v988
    %1053 = vst [vmem:[%s4 + $0x130] sm:$0xff] %v989
    %1054 = vst [vmem:[%s4 + $0x138] sm:$0xff] %v990
    %1055 = vst [vmem:[%s4 + $0x140] sm:$0xff] %v991
    %1056 = vst [vmem:[%s4 + $0x148] sm:$0xff] %v992
    %1057 = vst [vmem:[%s4 + $0x150] sm:$0xff] %v993
    %1058 = vst [vmem:[%s4 + $0x158] sm:$0xff] %v994
    %1059 = vst [vmem:[%s4 + $0x160] sm:$0xff] %v995
    %1060 = vst [vmem:[%s4 + $0x168] sm:$0xff] %v996
    %1061 = vst [vmem:[%s4 + $0x170] sm:$0xff] %v997
    %1062 = vst [vmem:[%s4 + $0x178] sm:$0xff] %v998
    %1063 = vst [vmem:[%s4 + $0x180] sm:$0xff] %v999
    %1064 = vst [vmem:[%s4 + $0x188] sm:$0xff] %v1000
    %1065 = vst [vmem:[%s4 + $0x190] sm:$0xff] %v1001
    %1066 = vst [vmem:[%s4 + $0x198] sm:$0xff] %v1002
    %1067 = vst [vmem:[%s4 + $0x1a0] sm:$0xff] %v1003
    %1068 = vst [vmem:[%s4 + $0x1a8] sm:$0xff] %v1004
    %1069 = vst [vmem:[%s4 + $0x1b0] sm:$0xff] %v1005
    %1070 = vst [vmem:[%s4 + $0x1b8] sm:$0xff] %v1006
    %1071 = vst [vmem:[%s4 + $0x1c0] sm:$0xff] %v1007
    %1072 = vst [vmem:[%s4 + $0x1c8] sm:$0xff] %v1008
    %1073 = vst [vmem:[%s4 + $0x1d0] sm:$0xff] %v1009
    %1074 = vst [vmem:[%s4 + $0x1d8] sm:$0xff] %v1010
    %1075 = vst [vmem:[%s4 + $0x1e0] sm:$0xff] %v1011
    %1076 = vst [vmem:[%s4 + $0x1e8] sm:$0xff] %v1012
    %1077 = vst [vmem:[%s4 + $0x1f0] sm:$0xff] %v1013
    %1078 = vst [vmem:[%s4 + $0x1f8] sm:$0xff] %v1014
  $region25: #{conv_decoder_forward.5} parent=0 // pred_fallthru
    _
  // Predicated region
  $region26: #{conv_decoder_forward.5} parent=0 // pred_check
    _
  $region27: #{conv_decoder_forward.5} parent=0 // pred_check_branch
    %1080 = sbr.rel (0) target = $region29
  $region28: #{conv_decoder_forward.5} parent=0 // pred_region
    _
  $region29: #{conv_decoder_forward.5} parent=0 // pred_fallthru
    _
  // Predicated region
  $region30: #{conv_decoder_forward.5} parent=0 // pred_check
    _
  $region31: #{conv_decoder_forward.5} parent=0 // pred_check_branch
    %1082 = sbr.rel (0) target = $region33
  $region32: #{conv_decoder_forward.5} parent=0 // pred_region
    _
  $region33: #{conv_decoder_forward.5} parent=0 // pred_fallthru
    _

</llo_original>
